<compile_context>
chip_gen: v7x
topology: tpu7x:2x2x1
jax: 0.10.0
libtpu: 0.0.40
codegen_flags: <defaults>
</compile_context>

<pallas_src>
import math

import jax
import jax.numpy as jnp
from jax.experimental import pallas as pl
from jax.experimental.pallas import tpu as pltpu

# ----------------- mini-BERT config (synthetic, small) -----------------
BATCH, SEQ = 2, 8
HIDDEN, HEADS = 32, 2
HEAD_DIM = HIDDEN // HEADS            # 16
INTER = 64                            # FFN intermediate size
LAYERS = 2
VOCAB = 128                           # stands in for len(BERT_TOKENIZER)
MAX_POS = 32
EPS = 1e-12                           # BERT LayerNorm eps
SCALE = 1.0 / math.sqrt(HEAD_DIM)     # folded into the Q projection at init
TOKENS = BATCH * SEQ                  # 16 (flattened tokens)
TOKENS2 = HEADS * TOKENS              # 32 (head-stacked tokens)

# NOTE: the in-kernel bit-trick masks assume HEADS == 2, BATCH == 2 and SEQ, TOKENS
# powers of two (true for this configuration).


# ----------------------------- fused Pallas kernel -----------------------------
def _fused_bert_kernel(ids_ref, mask_ref,
                       wemb_ref, pemb_ref, temb_ref,
                       emb_ln_g_ref, emb_ln_b_ref,
                       wqkv_ref, bqkv_ref, wo_ref, bo_ref,
                       ln1g_ref, ln1b_ref,
                       w1_ref, b1_ref, w2_ref, b2_ref,
                       ln2g_ref, ln2b_ref,
                       wc_ref, bc_ref, o_ref):
    """Whole mini-BERT forward: embeddings -> LAYERS encoder layers -> classifier -> softmax."""
    f32 = jnp.float32
    T, T2, H, Dh = TOKENS, TOKENS2, HIDDEN, HEAD_DIM

    def layer_norm(h, g, b):
        mean = jnp.mean(h, axis=-1, keepdims=True)
        c = h - mean
        var = jnp.mean(c * c, axis=-1, keepdims=True)
        return c * jax.lax.rsqrt(var + EPS) * g + b

    def softmax_rows(s, approx):
        s = s - jnp.max(s, axis=-1, keepdims=True)
        e = jnp.exp(s)
        denom = jnp.sum(e, axis=-1, keepdims=True)
        if approx:
            return e * pl.reciprocal(denom, approx=True)
        return e / denom

    # ---- embeddings: one-hot gather on the MXU (no XLA-side gather/adds) ----
    ids = ids_ref[...]                                                # (T, 1) int32
    vocab_iota = jax.lax.broadcasted_iota(jnp.int32, (T, VOCAB), 1)
    one_hot = (ids == vocab_iota).astype(f32)                         # (T, VOCAB)
    we = jnp.dot(one_hot, wemb_ref[...], preferred_element_type=f32)  # (T, H)
    pe_rows = pemb_ref[0:SEQ, :]                                      # (S, H)
    pe = jnp.concatenate([pe_rows] * BATCH, axis=0)                   # (T, H)
    emb = we + pe + temb_ref[0:1, :]                                  # token_type_ids == 0
    h = layer_norm(emb, emb_ln_g_ref[...], emb_ln_b_ref[...])

    # ---- additive attention bias on the head-stacked (T2, T2) score matrix ----
    # row/col index i: bit log2(T) selects the head block, bit log2(SEQ) the batch.
    ri = jax.lax.broadcasted_iota(jnp.int32, (T2, T2), 0)
    ci = jax.lax.broadcasted_iota(jnp.int32, (T2, T2), 1)
    same_head = jnp.bitwise_and(ri, T) == jnp.bitwise_and(ci, T)
    same_batch = jnp.bitwise_and(ri, SEQ) == jnp.bitwise_and(ci, SEQ)
    struct_bias = jnp.where(jnp.logical_and(same_head, same_batch), 0.0, -10000.0)
    keep = mask_ref[...]                                              # (1, T) f32
    keep2 = jnp.concatenate([keep] * HEADS, axis=1)                   # (1, T2)
    attn_bias = struct_bias + (1.0 - keep2) * -10000.0                # (T2, T2)

    zeros_th = jnp.zeros((T, H), f32)

    for l in range(LAYERS):                       # static unroll, no launch overhead
        # block-diag([h, h]) (T2, 2H): one matmul yields head-stacked Q|K|V (T2, 3*Dh)
        hd = jnp.concatenate(
            [jnp.concatenate([h if g == hh else zeros_th for g in range(HEADS)], axis=1)
             for hh in range(HEADS)], axis=0)                         # (T2, 2H)
        qkv = jnp.dot(hd, wqkv_ref[l], preferred_element_type=f32) + bqkv_ref[l]
        q_s = qkv[:, 0:Dh]                          # (T2, Dh) — 1/sqrt(Dh) pre-folded
        k_s = qkv[:, Dh:2 * Dh]
        v_s = qkv[:, 2 * Dh:3 * Dh]

        s = jax.lax.dot_general(q_s, k_s, (((1,), (1,)), ((), ())),
                                preferred_element_type=f32)           # (T2, T2)
        p = softmax_rows(s + attn_bias, approx=True)
        ctx = jnp.dot(p, v_s, preferred_element_type=f32)             # (T2, Dh), head-stacked
        ctx_cat = jnp.concatenate(
            [ctx[hh * T:(hh + 1) * T, :] for hh in range(HEADS)], axis=1)  # (T, H)
        attn_out = jnp.dot(ctx_cat, wo_ref[l], preferred_element_type=f32) + bo_ref[l]
        h = layer_norm(h + attn_out, ln1g_ref[l], ln1b_ref[l])

        # feed-forward
        ff = jnp.dot(h, w1_ref[l], preferred_element_type=f32) + b1_ref[l]
        # TODO(synk): HF BERT uses exact erf-GELU; tanh approximation used for Mosaic-safe lowering.
        ff = 0.5 * ff * (1.0 + jnp.tanh(0.7978845608028654 * (ff + 0.044715 * ff * ff * ff)))
        ff = jnp.dot(ff, w2_ref[l], preferred_element_type=f32) + b2_ref[l]
        h = layer_norm(h + ff, ln2g_ref[l], ln2b_ref[l])

    # classifier + softmax (output last dim = VOCAB = 128 -> lane-dense stores)
    logits = jnp.dot(h, wc_ref[...], preferred_element_type=f32) + bc_ref[...]
    o_ref[...] = softmax_rows(logits, approx=False)


# ------------------------------ wrapper -----------------------------------
def bert_lm_fused(ids, keep, p):
    tokens = ids.shape[0]
    args = (ids, keep,
            p["word_emb"], p["pos_emb"], p["type_emb"],
            p["emb_ln_g"], p["emb_ln_b"],
            p["wqkv"], p["bqkv"], p["wo"], p["bo"],
            p["ln1_g"], p["ln1_b"],
            p["w1"], p["b1"], p["w2"], p["b2"],
            p["ln2_g"], p["ln2_b"],
            p["wc"], p["bc"])
    vmem = pl.BlockSpec(memory_space=pltpu.MemorySpace.VMEM)
    return pl.pallas_call(                       # gridless: no pipeline/double-buffer overhead
        _fused_bert_kernel,
        out_shape=jax.ShapeDtypeStruct((tokens, VOCAB), jnp.float32),
        in_specs=[vmem] * len(args),
        out_specs=vmem,
    )(*args)


# ------------------------------ model --------------------------------------
def init_params(key):
    def normal(k, shape, scale=0.02):
        return (scale * jax.random.normal(k, shape)).astype(jnp.float32)

    keys = iter(jax.random.split(key, 16))
    L, H, I, V, Dh, nH = LAYERS, HIDDEN, INTER, VOCAB, HEAD_DIM, HEADS

    # wqkv rows [g*H:(g+1)*H] hold head g's [Wq | Wk | Wv]; block-diag([h, h]) @ wqkv in
    # the kernel then yields head-stacked Q|K|V.  The 1/sqrt(Dh) attention scale is
    # folded into the Q columns (and the Q bias, zero here).
    wqkv = normal(next(keys), (L, nH * H, 3 * Dh))
    wqkv = wqkv.at[:, :, 0:Dh].multiply(SCALE)

    return {
        "word_emb": normal(next(keys), (V, H)),
        "pos_emb": normal(next(keys), (MAX_POS, H)),
        "type_emb": normal(next(keys), (2, H)),
        "emb_ln_g": jnp.ones((1, H), jnp.float32),
        "emb_ln_b": jnp.zeros((1, H), jnp.float32),
        "wqkv": wqkv,
        "bqkv": jnp.zeros((L, nH * TOKENS, 3 * Dh), jnp.float32),
        "wo": normal(next(keys), (L, H, H)),
        "bo": jnp.zeros((L, 1, H), jnp.float32),
        "ln1_g": jnp.ones((L, 1, H), jnp.float32),
        "ln1_b": jnp.zeros((L, 1, H), jnp.float32),
        "w1": normal(next(keys), (L, H, I)),
        "b1": jnp.zeros((L, 1, I), jnp.float32),
        "w2": normal(next(keys), (L, I, H)),
        "b2": jnp.zeros((L, 1, H), jnp.float32),
        "ln2_g": jnp.ones((L, 1, H), jnp.float32),
        "ln2_b": jnp.zeros((L, 1, H), jnp.float32),
        "wc": normal(next(keys), (H, V)),
        "bc": jnp.zeros((1, V), jnp.float32),
    }


def language_model_forward(params, x_ids, xm):
    """Equivalent of LanguageModel.forward(x, xm, y=None) -> softmax probs."""
    # TODO(synk): training branch (cross-entropy when y is not None) not exercised here.
    B, S = x_ids.shape
    ids = x_ids.reshape(B * S, 1).astype(jnp.int32)      # word-emb gather done in-kernel
    keep = xm.reshape(1, B * S).astype(jnp.float32)      # attention bias built in-kernel
    probs = bert_lm_fused(ids, keep, params)             # (B*S, VOCAB)
    return probs.reshape(B, S, VOCAB)


if __name__ == "__main__":
    key = jax.random.PRNGKey(0)
    pkey, xkey = jax.random.split(key)
    params = init_params(pkey)

    x_ids = jax.random.randint(xkey, (BATCH, SEQ), 0, VOCAB, dtype=jnp.int32)
    xm = jnp.ones((BATCH, SEQ), dtype=jnp.int32)

    fwd = jax.jit(language_model_forward)
    probs = jax.block_until_ready(fwd(params, x_ids, xm))

    assert probs.shape == (BATCH, SEQ, VOCAB)
    assert bool(jnp.all(jnp.isfinite(probs)))
    row_sums = jnp.sum(probs, axis=-1)
    assert bool(jnp.all(jnp.abs(row_sums - 1.0) < 1e-4))
    print("KERNEL_OK")
</pallas_src>

<mosaic_0001>
module attributes {stable_mosaic.version = 11 : i64} {
  func.func @_fused_bert_kernel(%arg0: memref<16x1xi32, #tpu.memory_space<vmem>>, %arg1: memref<1x16xf32, #tpu.memory_space<vmem>>, %arg2: memref<128x32xf32, #tpu.memory_space<vmem>>, %arg3: memref<32x32xf32, #tpu.memory_space<vmem>>, %arg4: memref<2x32xf32, #tpu.memory_space<vmem>>, %arg5: memref<1x32xf32, #tpu.memory_space<vmem>>, %arg6: memref<1x32xf32, #tpu.memory_space<vmem>>, %arg7: memref<2x64x48xf32, #tpu.memory_space<vmem>>, %arg8: memref<2x32x48xf32, #tpu.memory_space<vmem>>, %arg9: memref<2x32x32xf32, #tpu.memory_space<vmem>>, %arg10: memref<2x1x32xf32, #tpu.memory_space<vmem>>, %arg11: memref<2x1x32xf32, #tpu.memory_space<vmem>>, %arg12: memref<2x1x32xf32, #tpu.memory_space<vmem>>, %arg13: memref<2x32x64xf32, #tpu.memory_space<vmem>>, %arg14: memref<2x1x64xf32, #tpu.memory_space<vmem>>, %arg15: memref<2x64x32xf32, #tpu.memory_space<vmem>>, %arg16: memref<2x1x32xf32, #tpu.memory_space<vmem>>, %arg17: memref<2x1x32xf32, #tpu.memory_space<vmem>>, %arg18: memref<2x1x32xf32, #tpu.memory_space<vmem>>, %arg19: memref<32x128xf32, #tpu.memory_space<vmem>>, %arg20: memref<1x128xf32, #tpu.memory_space<vmem>>, %arg21: memref<16x128xf32, #tpu.memory_space<vmem>>) attributes {dimension_semantics = [], scalar_prefetch = 0 : i64, scratch_operands = 0 : i64, tpu.core_type = #tpu.core_type<tc>} {
    %c0 = arith.constant 0 : index
    %c0_0 = arith.constant 0 : index
    %0 = vector.load %arg0[%c0, %c0_0] : memref<16x1xi32, #tpu.memory_space<vmem>>, vector<16x1xi32>
    %1 = tpu.iota {dimensions = array<i32: 1>} : vector<16x128xi32>
    %2 = vector.broadcast %0 : vector<16x1xi32> to vector<16x128xi32>
    %3 = arith.cmpi eq, %2, %1 : vector<16x128xi32>
    %4 = arith.extui %3 : vector<16x128xi1> to vector<16x128xi32>
    %5 = arith.sitofp %4 : vector<16x128xi32> to vector<16x128xf32>
    %c0_1 = arith.constant 0 : index
    %c0_2 = arith.constant 0 : index
    %6 = vector.load %arg2[%c0_1, %c0_2] : memref<128x32xf32, #tpu.memory_space<vmem>>, vector<128x32xf32>
    %cst = arith.constant dense<0.000000e+00> : vector<16x32xf32>
    %7 = tpu.matmul %5, %6, %cst {dimension_numbers = #tpu.dot_dimension_numbers<[1], [0], [0], [1], [0, 0, 1, 1], [], []>} : vector<16x128xf32>, vector<128x32xf32>, vector<16x32xf32> -> vector<16x32xf32>
    %c0_3 = arith.constant 0 : index
    %c0_4 = arith.constant 0 : index
    %8 = vector.load %arg3[%c0_3, %c0_4] : memref<32x32xf32, #tpu.memory_space<vmem>>, vector<8x32xf32>
    %9 = tpu.concatenate %8, %8 in 0 : vector<8x32xf32>, vector<8x32xf32> -> vector<16x32xf32>
    %10 = arith.addf %7, %9 : vector<16x32xf32>
    %c0_5 = arith.constant 0 : index
    %c0_6 = arith.constant 0 : index
    %11 = vector.load %arg4[%c0_5, %c0_6] : memref<2x32xf32, #tpu.memory_space<vmem>>, vector<1x32xf32>
    %12 = vector.broadcast %11 : vector<1x32xf32> to vector<16x32xf32>
    %13 = arith.addf %10, %12 : vector<16x32xf32>
    %c0_7 = arith.constant 0 : index
    %c0_8 = arith.constant 0 : index
    %14 = vector.load %arg5[%c0_7, %c0_8] : memref<1x32xf32, #tpu.memory_space<vmem>>, vector<1x32xf32>
    %c0_9 = arith.constant 0 : index
    %c0_10 = arith.constant 0 : index
    %15 = vector.load %arg6[%c0_9, %c0_10] : memref<1x32xf32, #tpu.memory_space<vmem>>, vector<1x32xf32>
    %cst_11 = arith.constant dense<0.000000e+00> : vector<16xf32>
    %16 = vector.multi_reduction <add>, %13, %cst_11 [1] : vector<16x32xf32> to vector<16xf32>
    %17 = vector.shape_cast %16 : vector<16xf32> to vector<16x1xf32>
    %cst_12 = arith.constant 3.200000e+01 : f32
    %18 = vector.broadcast %cst_12 : f32 to vector<16x1xf32>
    %19 = arith.divf %17, %18 : vector<16x1xf32>
    %20 = vector.broadcast %19 : vector<16x1xf32> to vector<16x32xf32>
    %21 = arith.subf %13, %20 : vector<16x32xf32>
    %22 = arith.mulf %21, %21 : vector<16x32xf32>
    %cst_13 = arith.constant dense<0.000000e+00> : vector<16xf32>
    %23 = vector.multi_reduction <add>, %22, %cst_13 [1] : vector<16x32xf32> to vector<16xf32>
    %24 = vector.shape_cast %23 : vector<16xf32> to vector<16x1xf32>
    %cst_14 = arith.constant 3.200000e+01 : f32
    %25 = vector.broadcast %cst_14 : f32 to vector<16x1xf32>
    %26 = arith.divf %24, %25 : vector<16x1xf32>
    %cst_15 = arith.constant 9.99999996E-13 : f32
    %27 = vector.broadcast %cst_15 : f32 to vector<16x1xf32>
    %28 = arith.addf %26, %27 : vector<16x1xf32>
    %29 = math.rsqrt %28 : vector<16x1xf32>
    %30 = vector.broadcast %29 : vector<16x1xf32> to vector<16x32xf32>
    %31 = arith.mulf %21, %30 : vector<16x32xf32>
    %32 = vector.broadcast %14 : vector<1x32xf32> to vector<16x32xf32>
    %33 = arith.mulf %31, %32 : vector<16x32xf32>
    %34 = vector.broadcast %15 : vector<1x32xf32> to vector<16x32xf32>
    %35 = arith.addf %33, %34 : vector<16x32xf32>
    %36 = tpu.iota {dimensions = array<i32: 0>} : vector<32x32xi32>
    %37 = tpu.iota {dimensions = array<i32: 1>} : vector<32x32xi32>
    %c16_i32 = arith.constant 16 : i32
    %38 = vector.broadcast %c16_i32 : i32 to vector<32x32xi32>
    %39 = arith.andi %36, %38 : vector<32x32xi32>
    %c16_i32_16 = arith.constant 16 : i32
    %40 = vector.broadcast %c16_i32_16 : i32 to vector<32x32xi32>
    %41 = arith.andi %37, %40 : vector<32x32xi32>
    %42 = arith.cmpi eq, %39, %41 : vector<32x32xi32>
    %c8_i32 = arith.constant 8 : i32
    %43 = vector.broadcast %c8_i32 : i32 to vector<32x32xi32>
    %44 = arith.andi %36, %43 : vector<32x32xi32>
    %c8_i32_17 = arith.constant 8 : i32
    %45 = vector.broadcast %c8_i32_17 : i32 to vector<32x32xi32>
    %46 = arith.andi %37, %45 : vector<32x32xi32>
    %47 = arith.cmpi eq, %44, %46 : vector<32x32xi32>
    %48 = arith.andi %42, %47 : vector<32x32xi1>
    %cst_18 = arith.constant 0.000000e+00 : f32
    %cst_19 = arith.constant -1.000000e+04 : f32
    %49 = vector.broadcast %cst_18 : f32 to vector<32x32xf32>
    %50 = vector.broadcast %cst_19 : f32 to vector<32x32xf32>
    %51 = arith.select %48, %49, %50 : vector<32x32xi1>, vector<32x32xf32>
    %c0_20 = arith.constant 0 : index
    %c0_21 = arith.constant 0 : index
    %52 = vector.load %arg1[%c0_20, %c0_21] : memref<1x16xf32, #tpu.memory_space<vmem>>, vector<1x16xf32>
    %53 = tpu.concatenate %52, %52 in 1 : vector<1x16xf32>, vector<1x16xf32> -> vector<1x32xf32>
    %cst_22 = arith.constant 1.000000e+00 : f32
    %54 = vector.broadcast %cst_22 : f32 to vector<1x32xf32>
    %55 = arith.subf %54, %53 : vector<1x32xf32>
    %cst_23 = arith.constant -1.000000e+04 : f32
    %56 = vector.broadcast %cst_23 : f32 to vector<1x32xf32>
    %57 = arith.mulf %55, %56 : vector<1x32xf32>
    %58 = vector.broadcast %57 : vector<1x32xf32> to vector<32x32xf32>
    %59 = arith.addf %51, %58 : vector<32x32xf32>
    %cst_24 = arith.constant 0.000000e+00 : f32
    %60 = vector.broadcast %cst_24 : f32 to vector<16x32xf32>
    %61 = tpu.concatenate %35, %60 in 1 : vector<16x32xf32>, vector<16x32xf32> -> vector<16x64xf32>
    %62 = tpu.concatenate %60, %35 in 1 : vector<16x32xf32>, vector<16x32xf32> -> vector<16x64xf32>
    %63 = tpu.concatenate %61, %62 in 0 : vector<16x64xf32>, vector<16x64xf32> -> vector<32x64xf32>
    %c0_25 = arith.constant 0 : index
    %c0_26 = arith.constant 0 : index
    %c0_27 = arith.constant 0 : index
    %64 = vector.load %arg7[%c0_25, %c0_26, %c0_27] : memref<2x64x48xf32, #tpu.memory_space<vmem>>, vector<1x64x48xf32>
    %65 = vector.shape_cast %64 : vector<1x64x48xf32> to vector<64x48xf32>
    %cst_28 = arith.constant dense<0.000000e+00> : vector<32x48xf32>
    %66 = tpu.matmul %63, %65, %cst_28 {dimension_numbers = #tpu.dot_dimension_numbers<[1], [0], [0], [1], [0, 0, 1, 1], [], []>} : vector<32x64xf32>, vector<64x48xf32>, vector<32x48xf32> -> vector<32x48xf32>
    %c0_29 = arith.constant 0 : index
    %c0_30 = arith.constant 0 : index
    %c0_31 = arith.constant 0 : index
    %67 = vector.load %arg8[%c0_29, %c0_30, %c0_31] : memref<2x32x48xf32, #tpu.memory_space<vmem>>, vector<1x32x48xf32>
    %68 = vector.shape_cast %67 : vector<1x32x48xf32> to vector<32x48xf32>
    %69 = arith.addf %66, %68 : vector<32x48xf32>
    %70 = vector.extract_strided_slice %69 {offsets = [0, 0], sizes = [32, 16], strides = [1, 1]} : vector<32x48xf32> to vector<32x16xf32>
    %71 = vector.extract_strided_slice %69 {offsets = [0, 16], sizes = [32, 16], strides = [1, 1]} : vector<32x48xf32> to vector<32x16xf32>
    %72 = vector.extract_strided_slice %69 {offsets = [0, 32], sizes = [32, 16], strides = [1, 1]} : vector<32x48xf32> to vector<32x16xf32>
    %cst_32 = arith.constant dense<0.000000e+00> : vector<32x32xf32>
    %73 = tpu.matmul %70, %71, %cst_32 {dimension_numbers = #tpu.dot_dimension_numbers<[1], [1], [0], [0], [0, 0, 1, 0], [], []>} : vector<32x16xf32>, vector<32x16xf32>, vector<32x32xf32> -> vector<32x32xf32>
    %74 = arith.addf %73, %59 : vector<32x32xf32>
    %cst_33 = arith.constant dense<0xFF800000> : vector<32xf32>
    %75 = vector.multi_reduction <maximumf>, %74, %cst_33 [1] : vector<32x32xf32> to vector<32xf32>
    %76 = vector.shape_cast %75 : vector<32xf32> to vector<32x1xf32>
    %77 = vector.broadcast %76 : vector<32x1xf32> to vector<32x32xf32>
    %78 = arith.subf %74, %77 : vector<32x32xf32>
    %79 = math.exp %78 : vector<32x32xf32>
    %cst_34 = arith.constant dense<0.000000e+00> : vector<32xf32>
    %80 = vector.multi_reduction <add>, %79, %cst_34 [1] : vector<32x32xf32> to vector<32xf32>
    %81 = vector.shape_cast %80 : vector<32xf32> to vector<32x1xf32>
    %82 = tpu.reciprocal %81 {approx = true} : vector<32x1xf32> -> vector<32x1xf32>
    %83 = vector.broadcast %82 : vector<32x1xf32> to vector<32x32xf32>
    %84 = arith.mulf %79, %83 : vector<32x32xf32>
    %cst_35 = arith.constant dense<0.000000e+00> : vector<32x16xf32>
    %85 = tpu.matmul %84, %72, %cst_35 {dimension_numbers = #tpu.dot_dimension_numbers<[1], [0], [0], [1], [0, 0, 1, 1], [], []>} : vector<32x32xf32>, vector<32x16xf32>, vector<32x16xf32> -> vector<32x16xf32>
    %86 = vector.extract_strided_slice %85 {offsets = [0, 0], sizes = [16, 16], strides = [1, 1]} : vector<32x16xf32> to vector<16x16xf32>
    %87 = vector.extract_strided_slice %85 {offsets = [16, 0], sizes = [16, 16], strides = [1, 1]} : vector<32x16xf32> to vector<16x16xf32>
    %88 = tpu.concatenate %86, %87 in 1 : vector<16x16xf32>, vector<16x16xf32> -> vector<16x32xf32>
    %c0_36 = arith.constant 0 : index
    %c0_37 = arith.constant 0 : index
    %c0_38 = arith.constant 0 : index
    %89 = vector.load %arg9[%c0_36, %c0_37, %c0_38] : memref<2x32x32xf32, #tpu.memory_space<vmem>>, vector<1x32x32xf32>
    %90 = vector.shape_cast %89 : vector<1x32x32xf32> to vector<32x32xf32>
    %cst_39 = arith.constant dense<0.000000e+00> : vector<16x32xf32>
    %91 = tpu.matmul %88, %90, %cst_39 {dimension_numbers = #tpu.dot_dimension_numbers<[1], [0], [0], [1], [0, 0, 1, 1], [], []>} : vector<16x32xf32>, vector<32x32xf32>, vector<16x32xf32> -> vector<16x32xf32>
    %c0_40 = arith.constant 0 : index
    %c0_41 = arith.constant 0 : index
    %c0_42 = arith.constant 0 : index
    %92 = vector.load %arg10[%c0_40, %c0_41, %c0_42] : memref<2x1x32xf32, #tpu.memory_space<vmem>>, vector<1x1x32xf32>
    %93 = vector.shape_cast %92 : vector<1x1x32xf32> to vector<1x32xf32>
    %94 = vector.broadcast %93 : vector<1x32xf32> to vector<16x32xf32>
    %95 = arith.addf %91, %94 : vector<16x32xf32>
    %96 = arith.addf %35, %95 : vector<16x32xf32>
    %c0_43 = arith.constant 0 : index
    %c0_44 = arith.constant 0 : index
    %c0_45 = arith.constant 0 : index
    %97 = vector.load %arg11[%c0_43, %c0_44, %c0_45] : memref<2x1x32xf32, #tpu.memory_space<vmem>>, vector<1x1x32xf32>
    %98 = vector.shape_cast %97 : vector<1x1x32xf32> to vector<1x32xf32>
    %c0_46 = arith.constant 0 : index
    %c0_47 = arith.constant 0 : index
    %c0_48 = arith.constant 0 : index
    %99 = vector.load %arg12[%c0_46, %c0_47, %c0_48] : memref<2x1x32xf32, #tpu.memory_space<vmem>>, vector<1x1x32xf32>
    %100 = vector.shape_cast %99 : vector<1x1x32xf32> to vector<1x32xf32>
    %cst_49 = arith.constant dense<0.000000e+00> : vector<16xf32>
    %101 = vector.multi_reduction <add>, %96, %cst_49 [1] : vector<16x32xf32> to vector<16xf32>
    %102 = vector.shape_cast %101 : vector<16xf32> to vector<16x1xf32>
    %cst_50 = arith.constant 3.200000e+01 : f32
    %103 = vector.broadcast %cst_50 : f32 to vector<16x1xf32>
    %104 = arith.divf %102, %103 : vector<16x1xf32>
    %105 = vector.broadcast %104 : vector<16x1xf32> to vector<16x32xf32>
    %106 = arith.subf %96, %105 : vector<16x32xf32>
    %107 = arith.mulf %106, %106 : vector<16x32xf32>
    %cst_51 = arith.constant dense<0.000000e+00> : vector<16xf32>
    %108 = vector.multi_reduction <add>, %107, %cst_51 [1] : vector<16x32xf32> to vector<16xf32>
    %109 = vector.shape_cast %108 : vector<16xf32> to vector<16x1xf32>
    %cst_52 = arith.constant 3.200000e+01 : f32
    %110 = vector.broadcast %cst_52 : f32 to vector<16x1xf32>
    %111 = arith.divf %109, %110 : vector<16x1xf32>
    %cst_53 = arith.constant 9.99999996E-13 : f32
    %112 = vector.broadcast %cst_53 : f32 to vector<16x1xf32>
    %113 = arith.addf %111, %112 : vector<16x1xf32>
    %114 = math.rsqrt %113 : vector<16x1xf32>
    %115 = vector.broadcast %114 : vector<16x1xf32> to vector<16x32xf32>
    %116 = arith.mulf %106, %115 : vector<16x32xf32>
    %117 = vector.broadcast %98 : vector<1x32xf32> to vector<16x32xf32>
    %118 = arith.mulf %116, %117 : vector<16x32xf32>
    %119 = vector.broadcast %100 : vector<1x32xf32> to vector<16x32xf32>
    %120 = arith.addf %118, %119 : vector<16x32xf32>
    %c0_54 = arith.constant 0 : index
    %c0_55 = arith.constant 0 : index
    %c0_56 = arith.constant 0 : index
    %121 = vector.load %arg13[%c0_54, %c0_55, %c0_56] : memref<2x32x64xf32, #tpu.memory_space<vmem>>, vector<1x32x64xf32>
    %122 = vector.shape_cast %121 : vector<1x32x64xf32> to vector<32x64xf32>
    %cst_57 = arith.constant dense<0.000000e+00> : vector<16x64xf32>
    %123 = tpu.matmul %120, %122, %cst_57 {dimension_numbers = #tpu.dot_dimension_numbers<[1], [0], [0], [1], [0, 0, 1, 1], [], []>} : vector<16x32xf32>, vector<32x64xf32>, vector<16x64xf32> -> vector<16x64xf32>
    %c0_58 = arith.constant 0 : index
    %c0_59 = arith.constant 0 : index
    %c0_60 = arith.constant 0 : index
    %124 = vector.load %arg14[%c0_58, %c0_59, %c0_60] : memref<2x1x64xf32, #tpu.memory_space<vmem>>, vector<1x1x64xf32>
    %125 = vector.shape_cast %124 : vector<1x1x64xf32> to vector<1x64xf32>
    %126 = vector.broadcast %125 : vector<1x64xf32> to vector<16x64xf32>
    %127 = arith.addf %123, %126 : vector<16x64xf32>
    %cst_61 = arith.constant 5.000000e-01 : f32
    %128 = vector.broadcast %cst_61 : f32 to vector<16x64xf32>
    %129 = arith.mulf %128, %127 : vector<16x64xf32>
    %cst_62 = arith.constant 4.471500e-02 : f32
    %130 = vector.broadcast %cst_62 : f32 to vector<16x64xf32>
    %131 = arith.mulf %130, %127 : vector<16x64xf32>
    %132 = arith.mulf %131, %127 : vector<16x64xf32>
    %133 = arith.mulf %132, %127 : vector<16x64xf32>
    %134 = arith.addf %127, %133 : vector<16x64xf32>
    %cst_63 = arith.constant 0.797884583 : f32
    %135 = vector.broadcast %cst_63 : f32 to vector<16x64xf32>
    %136 = arith.mulf %135, %134 : vector<16x64xf32>
    %137 = math.tanh %136 : vector<16x64xf32>
    %cst_64 = arith.constant 1.000000e+00 : f32
    %138 = vector.broadcast %cst_64 : f32 to vector<16x64xf32>
    %139 = arith.addf %138, %137 : vector<16x64xf32>
    %140 = arith.mulf %129, %139 : vector<16x64xf32>
    %c0_65 = arith.constant 0 : index
    %c0_66 = arith.constant 0 : index
    %c0_67 = arith.constant 0 : index
    %141 = vector.load %arg15[%c0_65, %c0_66, %c0_67] : memref<2x64x32xf32, #tpu.memory_space<vmem>>, vector<1x64x32xf32>
    %142 = vector.shape_cast %141 : vector<1x64x32xf32> to vector<64x32xf32>
    %cst_68 = arith.constant dense<0.000000e+00> : vector<16x32xf32>
    %143 = tpu.matmul %140, %142, %cst_68 {dimension_numbers = #tpu.dot_dimension_numbers<[1], [0], [0], [1], [0, 0, 1, 1], [], []>} : vector<16x64xf32>, vector<64x32xf32>, vector<16x32xf32> -> vector<16x32xf32>
    %c0_69 = arith.constant 0 : index
    %c0_70 = arith.constant 0 : index
    %c0_71 = arith.constant 0 : index
    %144 = vector.load %arg16[%c0_69, %c0_70, %c0_71] : memref<2x1x32xf32, #tpu.memory_space<vmem>>, vector<1x1x32xf32>
    %145 = vector.shape_cast %144 : vector<1x1x32xf32> to vector<1x32xf32>
    %146 = vector.broadcast %145 : vector<1x32xf32> to vector<16x32xf32>
    %147 = arith.addf %143, %146 : vector<16x32xf32>
    %148 = arith.addf %120, %147 : vector<16x32xf32>
    %c0_72 = arith.constant 0 : index
    %c0_73 = arith.constant 0 : index
    %c0_74 = arith.constant 0 : index
    %149 = vector.load %arg17[%c0_72, %c0_73, %c0_74] : memref<2x1x32xf32, #tpu.memory_space<vmem>>, vector<1x1x32xf32>
    %150 = vector.shape_cast %149 : vector<1x1x32xf32> to vector<1x32xf32>
    %c0_75 = arith.constant 0 : index
    %c0_76 = arith.constant 0 : index
    %c0_77 = arith.constant 0 : index
    %151 = vector.load %arg18[%c0_75, %c0_76, %c0_77] : memref<2x1x32xf32, #tpu.memory_space<vmem>>, vector<1x1x32xf32>
    %152 = vector.shape_cast %151 : vector<1x1x32xf32> to vector<1x32xf32>
    %cst_78 = arith.constant dense<0.000000e+00> : vector<16xf32>
    %153 = vector.multi_reduction <add>, %148, %cst_78 [1] : vector<16x32xf32> to vector<16xf32>
    %154 = vector.shape_cast %153 : vector<16xf32> to vector<16x1xf32>
    %cst_79 = arith.constant 3.200000e+01 : f32
    %155 = vector.broadcast %cst_79 : f32 to vector<16x1xf32>
    %156 = arith.divf %154, %155 : vector<16x1xf32>
    %157 = vector.broadcast %156 : vector<16x1xf32> to vector<16x32xf32>
    %158 = arith.subf %148, %157 : vector<16x32xf32>
    %159 = arith.mulf %158, %158 : vector<16x32xf32>
    %cst_80 = arith.constant dense<0.000000e+00> : vector<16xf32>
    %160 = vector.multi_reduction <add>, %159, %cst_80 [1] : vector<16x32xf32> to vector<16xf32>
    %161 = vector.shape_cast %160 : vector<16xf32> to vector<16x1xf32>
    %cst_81 = arith.constant 3.200000e+01 : f32
    %162 = vector.broadcast %cst_81 : f32 to vector<16x1xf32>
    %163 = arith.divf %161, %162 : vector<16x1xf32>
    %cst_82 = arith.constant 9.99999996E-13 : f32
    %164 = vector.broadcast %cst_82 : f32 to vector<16x1xf32>
    %165 = arith.addf %163, %164 : vector<16x1xf32>
    %166 = math.rsqrt %165 : vector<16x1xf32>
    %167 = vector.broadcast %166 : vector<16x1xf32> to vector<16x32xf32>
    %168 = arith.mulf %158, %167 : vector<16x32xf32>
    %169 = vector.broadcast %150 : vector<1x32xf32> to vector<16x32xf32>
    %170 = arith.mulf %168, %169 : vector<16x32xf32>
    %171 = vector.broadcast %152 : vector<1x32xf32> to vector<16x32xf32>
    %172 = arith.addf %170, %171 : vector<16x32xf32>
    %173 = tpu.concatenate %172, %60 in 1 : vector<16x32xf32>, vector<16x32xf32> -> vector<16x64xf32>
    %174 = tpu.concatenate %60, %172 in 1 : vector<16x32xf32>, vector<16x32xf32> -> vector<16x64xf32>
    %175 = tpu.concatenate %173, %174 in 0 : vector<16x64xf32>, vector<16x64xf32> -> vector<32x64xf32>
    %c1 = arith.constant 1 : index
    %c0_83 = arith.constant 0 : index
    %c0_84 = arith.constant 0 : index
    %176 = vector.load %arg7[%c1, %c0_83, %c0_84] : memref<2x64x48xf32, #tpu.memory_space<vmem>>, vector<1x64x48xf32>
    %177 = vector.shape_cast %176 : vector<1x64x48xf32> to vector<64x48xf32>
    %cst_85 = arith.constant dense<0.000000e+00> : vector<32x48xf32>
    %178 = tpu.matmul %175, %177, %cst_85 {dimension_numbers = #tpu.dot_dimension_numbers<[1], [0], [0], [1], [0, 0, 1, 1], [], []>} : vector<32x64xf32>, vector<64x48xf32>, vector<32x48xf32> -> vector<32x48xf32>
    %c1_86 = arith.constant 1 : index
    %c0_87 = arith.constant 0 : index
    %c0_88 = arith.constant 0 : index
    %179 = vector.load %arg8[%c1_86, %c0_87, %c0_88] : memref<2x32x48xf32, #tpu.memory_space<vmem>>, vector<1x32x48xf32>
    %180 = vector.shape_cast %179 : vector<1x32x48xf32> to vector<32x48xf32>
    %181 = arith.addf %178, %180 : vector<32x48xf32>
    %182 = vector.extract_strided_slice %181 {offsets = [0, 0], sizes = [32, 16], strides = [1, 1]} : vector<32x48xf32> to vector<32x16xf32>
    %183 = vector.extract_strided_slice %181 {offsets = [0, 16], sizes = [32, 16], strides = [1, 1]} : vector<32x48xf32> to vector<32x16xf32>
    %184 = vector.extract_strided_slice %181 {offsets = [0, 32], sizes = [32, 16], strides = [1, 1]} : vector<32x48xf32> to vector<32x16xf32>
    %cst_89 = arith.constant dense<0.000000e+00> : vector<32x32xf32>
    %185 = tpu.matmul %182, %183, %cst_89 {dimension_numbers = #tpu.dot_dimension_numbers<[1], [1], [0], [0], [0, 0, 1, 0], [], []>} : vector<32x16xf32>, vector<32x16xf32>, vector<32x32xf32> -> vector<32x32xf32>
    %186 = arith.addf %185, %59 : vector<32x32xf32>
    %cst_90 = arith.constant dense<0xFF800000> : vector<32xf32>
    %187 = vector.multi_reduction <maximumf>, %186, %cst_90 [1] : vector<32x32xf32> to vector<32xf32>
    %188 = vector.shape_cast %187 : vector<32xf32> to vector<32x1xf32>
    %189 = vector.broadcast %188 : vector<32x1xf32> to vector<32x32xf32>
    %190 = arith.subf %186, %189 : vector<32x32xf32>
    %191 = math.exp %190 : vector<32x32xf32>
    %cst_91 = arith.constant dense<0.000000e+00> : vector<32xf32>
    %192 = vector.multi_reduction <add>, %191, %cst_91 [1] : vector<32x32xf32> to vector<32xf32>
    %193 = vector.shape_cast %192 : vector<32xf32> to vector<32x1xf32>
    %194 = tpu.reciprocal %193 {approx = true} : vector<32x1xf32> -> vector<32x1xf32>
    %195 = vector.broadcast %194 : vector<32x1xf32> to vector<32x32xf32>
    %196 = arith.mulf %191, %195 : vector<32x32xf32>
    %cst_92 = arith.constant dense<0.000000e+00> : vector<32x16xf32>
    %197 = tpu.matmul %196, %184, %cst_92 {dimension_numbers = #tpu.dot_dimension_numbers<[1], [0], [0], [1], [0, 0, 1, 1], [], []>} : vector<32x32xf32>, vector<32x16xf32>, vector<32x16xf32> -> vector<32x16xf32>
    %198 = vector.extract_strided_slice %197 {offsets = [0, 0], sizes = [16, 16], strides = [1, 1]} : vector<32x16xf32> to vector<16x16xf32>
    %199 = vector.extract_strided_slice %197 {offsets = [16, 0], sizes = [16, 16], strides = [1, 1]} : vector<32x16xf32> to vector<16x16xf32>
    %200 = tpu.concatenate %198, %199 in 1 : vector<16x16xf32>, vector<16x16xf32> -> vector<16x32xf32>
    %c1_93 = arith.constant 1 : index
    %c0_94 = arith.constant 0 : index
    %c0_95 = arith.constant 0 : index
    %201 = vector.load %arg9[%c1_93, %c0_94, %c0_95] : memref<2x32x32xf32, #tpu.memory_space<vmem>>, vector<1x32x32xf32>
    %202 = vector.shape_cast %201 : vector<1x32x32xf32> to vector<32x32xf32>
    %cst_96 = arith.constant dense<0.000000e+00> : vector<16x32xf32>
    %203 = tpu.matmul %200, %202, %cst_96 {dimension_numbers = #tpu.dot_dimension_numbers<[1], [0], [0], [1], [0, 0, 1, 1], [], []>} : vector<16x32xf32>, vector<32x32xf32>, vector<16x32xf32> -> vector<16x32xf32>
    %c1_97 = arith.constant 1 : index
    %c0_98 = arith.constant 0 : index
    %c0_99 = arith.constant 0 : index
    %204 = vector.load %arg10[%c1_97, %c0_98, %c0_99] : memref<2x1x32xf32, #tpu.memory_space<vmem>>, vector<1x1x32xf32>
    %205 = vector.shape_cast %204 : vector<1x1x32xf32> to vector<1x32xf32>
    %206 = vector.broadcast %205 : vector<1x32xf32> to vector<16x32xf32>
    %207 = arith.addf %203, %206 : vector<16x32xf32>
    %208 = arith.addf %172, %207 : vector<16x32xf32>
    %c1_100 = arith.constant 1 : index
    %c0_101 = arith.constant 0 : index
    %c0_102 = arith.constant 0 : index
    %209 = vector.load %arg11[%c1_100, %c0_101, %c0_102] : memref<2x1x32xf32, #tpu.memory_space<vmem>>, vector<1x1x32xf32>
    %210 = vector.shape_cast %209 : vector<1x1x32xf32> to vector<1x32xf32>
    %c1_103 = arith.constant 1 : index
    %c0_104 = arith.constant 0 : index
    %c0_105 = arith.constant 0 : index
    %211 = vector.load %arg12[%c1_103, %c0_104, %c0_105] : memref<2x1x32xf32, #tpu.memory_space<vmem>>, vector<1x1x32xf32>
    %212 = vector.shape_cast %211 : vector<1x1x32xf32> to vector<1x32xf32>
    %cst_106 = arith.constant dense<0.000000e+00> : vector<16xf32>
    %213 = vector.multi_reduction <add>, %208, %cst_106 [1] : vector<16x32xf32> to vector<16xf32>
    %214 = vector.shape_cast %213 : vector<16xf32> to vector<16x1xf32>
    %cst_107 = arith.constant 3.200000e+01 : f32
    %215 = vector.broadcast %cst_107 : f32 to vector<16x1xf32>
    %216 = arith.divf %214, %215 : vector<16x1xf32>
    %217 = vector.broadcast %216 : vector<16x1xf32> to vector<16x32xf32>
    %218 = arith.subf %208, %217 : vector<16x32xf32>
    %219 = arith.mulf %218, %218 : vector<16x32xf32>
    %cst_108 = arith.constant dense<0.000000e+00> : vector<16xf32>
    %220 = vector.multi_reduction <add>, %219, %cst_108 [1] : vector<16x32xf32> to vector<16xf32>
    %221 = vector.shape_cast %220 : vector<16xf32> to vector<16x1xf32>
    %cst_109 = arith.constant 3.200000e+01 : f32
    %222 = vector.broadcast %cst_109 : f32 to vector<16x1xf32>
    %223 = arith.divf %221, %222 : vector<16x1xf32>
    %cst_110 = arith.constant 9.99999996E-13 : f32
    %224 = vector.broadcast %cst_110 : f32 to vector<16x1xf32>
    %225 = arith.addf %223, %224 : vector<16x1xf32>
    %226 = math.rsqrt %225 : vector<16x1xf32>
    %227 = vector.broadcast %226 : vector<16x1xf32> to vector<16x32xf32>
    %228 = arith.mulf %218, %227 : vector<16x32xf32>
    %229 = vector.broadcast %210 : vector<1x32xf32> to vector<16x32xf32>
    %230 = arith.mulf %228, %229 : vector<16x32xf32>
    %231 = vector.broadcast %212 : vector<1x32xf32> to vector<16x32xf32>
    %232 = arith.addf %230, %231 : vector<16x32xf32>
    %c1_111 = arith.constant 1 : index
    %c0_112 = arith.constant 0 : index
    %c0_113 = arith.constant 0 : index
    %233 = vector.load %arg13[%c1_111, %c0_112, %c0_113] : memref<2x32x64xf32, #tpu.memory_space<vmem>>, vector<1x32x64xf32>
    %234 = vector.shape_cast %233 : vector<1x32x64xf32> to vector<32x64xf32>
    %cst_114 = arith.constant dense<0.000000e+00> : vector<16x64xf32>
    %235 = tpu.matmul %232, %234, %cst_114 {dimension_numbers = #tpu.dot_dimension_numbers<[1], [0], [0], [1], [0, 0, 1, 1], [], []>} : vector<16x32xf32>, vector<32x64xf32>, vector<16x64xf32> -> vector<16x64xf32>
    %c1_115 = arith.constant 1 : index
    %c0_116 = arith.constant 0 : index
    %c0_117 = arith.constant 0 : index
    %236 = vector.load %arg14[%c1_115, %c0_116, %c0_117] : memref<2x1x64xf32, #tpu.memory_space<vmem>>, vector<1x1x64xf32>
    %237 = vector.shape_cast %236 : vector<1x1x64xf32> to vector<1x64xf32>
    %238 = vector.broadcast %237 : vector<1x64xf32> to vector<16x64xf32>
    %239 = arith.addf %235, %238 : vector<16x64xf32>
    %cst_118 = arith.constant 5.000000e-01 : f32
    %240 = vector.broadcast %cst_118 : f32 to vector<16x64xf32>
    %241 = arith.mulf %240, %239 : vector<16x64xf32>
    %cst_119 = arith.constant 4.471500e-02 : f32
    %242 = vector.broadcast %cst_119 : f32 to vector<16x64xf32>
    %243 = arith.mulf %242, %239 : vector<16x64xf32>
    %244 = arith.mulf %243, %239 : vector<16x64xf32>
    %245 = arith.mulf %244, %239 : vector<16x64xf32>
    %246 = arith.addf %239, %245 : vector<16x64xf32>
    %cst_120 = arith.constant 0.797884583 : f32
    %247 = vector.broadcast %cst_120 : f32 to vector<16x64xf32>
    %248 = arith.mulf %247, %246 : vector<16x64xf32>
    %249 = math.tanh %248 : vector<16x64xf32>
    %cst_121 = arith.constant 1.000000e+00 : f32
    %250 = vector.broadcast %cst_121 : f32 to vector<16x64xf32>
    %251 = arith.addf %250, %249 : vector<16x64xf32>
    %252 = arith.mulf %241, %251 : vector<16x64xf32>
    %c1_122 = arith.constant 1 : index
    %c0_123 = arith.constant 0 : index
    %c0_124 = arith.constant 0 : index
    %253 = vector.load %arg15[%c1_122, %c0_123, %c0_124] : memref<2x64x32xf32, #tpu.memory_space<vmem>>, vector<1x64x32xf32>
    %254 = vector.shape_cast %253 : vector<1x64x32xf32> to vector<64x32xf32>
    %cst_125 = arith.constant dense<0.000000e+00> : vector<16x32xf32>
    %255 = tpu.matmul %252, %254, %cst_125 {dimension_numbers = #tpu.dot_dimension_numbers<[1], [0], [0], [1], [0, 0, 1, 1], [], []>} : vector<16x64xf32>, vector<64x32xf32>, vector<16x32xf32> -> vector<16x32xf32>
    %c1_126 = arith.constant 1 : index
    %c0_127 = arith.constant 0 : index
    %c0_128 = arith.constant 0 : index
    %256 = vector.load %arg16[%c1_126, %c0_127, %c0_128] : memref<2x1x32xf32, #tpu.memory_space<vmem>>, vector<1x1x32xf32>
    %257 = vector.shape_cast %256 : vector<1x1x32xf32> to vector<1x32xf32>
    %258 = vector.broadcast %257 : vector<1x32xf32> to vector<16x32xf32>
    %259 = arith.addf %255, %258 : vector<16x32xf32>
    %260 = arith.addf %232, %259 : vector<16x32xf32>
    %c1_129 = arith.constant 1 : index
    %c0_130 = arith.constant 0 : index
    %c0_131 = arith.constant 0 : index
    %261 = vector.load %arg17[%c1_129, %c0_130, %c0_131] : memref<2x1x32xf32, #tpu.memory_space<vmem>>, vector<1x1x32xf32>
    %262 = vector.shape_cast %261 : vector<1x1x32xf32> to vector<1x32xf32>
    %c1_132 = arith.constant 1 : index
    %c0_133 = arith.constant 0 : index
    %c0_134 = arith.constant 0 : index
    %263 = vector.load %arg18[%c1_132, %c0_133, %c0_134] : memref<2x1x32xf32, #tpu.memory_space<vmem>>, vector<1x1x32xf32>
    %264 = vector.shape_cast %263 : vector<1x1x32xf32> to vector<1x32xf32>
    %cst_135 = arith.constant dense<0.000000e+00> : vector<16xf32>
    %265 = vector.multi_reduction <add>, %260, %cst_135 [1] : vector<16x32xf32> to vector<16xf32>
    %266 = vector.shape_cast %265 : vector<16xf32> to vector<16x1xf32>
    %cst_136 = arith.constant 3.200000e+01 : f32
    %267 = vector.broadcast %cst_136 : f32 to vector<16x1xf32>
    %268 = arith.divf %266, %267 : vector<16x1xf32>
    %269 = vector.broadcast %268 : vector<16x1xf32> to vector<16x32xf32>
    %270 = arith.subf %260, %269 : vector<16x32xf32>
    %271 = arith.mulf %270, %270 : vector<16x32xf32>
    %cst_137 = arith.constant dense<0.000000e+00> : vector<16xf32>
    %272 = vector.multi_reduction <add>, %271, %cst_137 [1] : vector<16x32xf32> to vector<16xf32>
    %273 = vector.shape_cast %272 : vector<16xf32> to vector<16x1xf32>
    %cst_138 = arith.constant 3.200000e+01 : f32
    %274 = vector.broadcast %cst_138 : f32 to vector<16x1xf32>
    %275 = arith.divf %273, %274 : vector<16x1xf32>
    %cst_139 = arith.constant 9.99999996E-13 : f32
    %276 = vector.broadcast %cst_139 : f32 to vector<16x1xf32>
    %277 = arith.addf %275, %276 : vector<16x1xf32>
    %278 = math.rsqrt %277 : vector<16x1xf32>
    %279 = vector.broadcast %278 : vector<16x1xf32> to vector<16x32xf32>
    %280 = arith.mulf %270, %279 : vector<16x32xf32>
    %281 = vector.broadcast %262 : vector<1x32xf32> to vector<16x32xf32>
    %282 = arith.mulf %280, %281 : vector<16x32xf32>
    %283 = vector.broadcast %264 : vector<1x32xf32> to vector<16x32xf32>
    %284 = arith.addf %282, %283 : vector<16x32xf32>
    %c0_140 = arith.constant 0 : index
    %c0_141 = arith.constant 0 : index
    %285 = vector.load %arg19[%c0_140, %c0_141] : memref<32x128xf32, #tpu.memory_space<vmem>>, vector<32x128xf32>
    %cst_142 = arith.constant dense<0.000000e+00> : vector<16x128xf32>
    %286 = tpu.matmul %284, %285, %cst_142 {dimension_numbers = #tpu.dot_dimension_numbers<[1], [0], [0], [1], [0, 0, 1, 1], [], []>} : vector<16x32xf32>, vector<32x128xf32>, vector<16x128xf32> -> vector<16x128xf32>
    %c0_143 = arith.constant 0 : index
    %c0_144 = arith.constant 0 : index
    %287 = vector.load %arg20[%c0_143, %c0_144] : memref<1x128xf32, #tpu.memory_space<vmem>>, vector<1x128xf32>
    %288 = vector.broadcast %287 : vector<1x128xf32> to vector<16x128xf32>
    %289 = arith.addf %286, %288 : vector<16x128xf32>
    %cst_145 = arith.constant dense<0xFF800000> : vector<16xf32>
    %290 = vector.multi_reduction <maximumf>, %289, %cst_145 [1] : vector<16x128xf32> to vector<16xf32>
    %291 = vector.shape_cast %290 : vector<16xf32> to vector<16x1xf32>
    %292 = vector.broadcast %291 : vector<16x1xf32> to vector<16x128xf32>
    %293 = arith.subf %289, %292 : vector<16x128xf32>
    %294 = math.exp %293 : vector<16x128xf32>
    %cst_146 = arith.constant dense<0.000000e+00> : vector<16xf32>
    %295 = vector.multi_reduction <add>, %294, %cst_146 [1] : vector<16x128xf32> to vector<16xf32>
    %296 = vector.shape_cast %295 : vector<16xf32> to vector<16x1xf32>
    %297 = vector.broadcast %296 : vector<16x1xf32> to vector<16x128xf32>
    %298 = arith.divf %294, %297 : vector<16x128xf32>
    %c0_147 = arith.constant 0 : index
    %c0_148 = arith.constant 0 : index
    %299 = vector.load %arg21[%c0_147, %c0_148] : memref<16x128xf32, #tpu.memory_space<vmem>>, vector<16x128xf32>
    tpu.vector_store %arg21[%c0_147, %c0_148], %298 {strides = array<i32>} : memref<16x128xf32, #tpu.memory_space<vmem>>, vector<16x128xf32>,
    return
  }
}

</mosaic_0001>

<llo_original>
// kernel: language_model_forward.1
$region0: #{language_model_forward.1}
  #allocation0 [shape = 'u32[]', space=smem, size = 0x4, offset = 0x4, fixed_abs, tag = 'smem constant byte address 0x4 - core index']
  #allocation1 [shape = 'u32[144,128]{1,0:T(1,128)}', space=vmem, size = 0x12000, scoped, tag = 'internal scratch']
  %s0 = inlined_call_operand.vmem [shape: s32[16,1], index: 0, kind: input, shape index: {}]
  %s1 = inlined_call_operand.vmem [shape: f32[1,16], index: 1, kind: input, shape index: {}]
  %s2 = inlined_call_operand.vmem [shape: f32[128,32], index: 2, kind: input, shape index: {}]
  %s3 = inlined_call_operand.vmem [shape: f32[32,32], index: 3, kind: input, shape index: {}]
  %s4 = inlined_call_operand.vmem [shape: f32[2,32], index: 4, kind: input, shape index: {}]
  %s5 = inlined_call_operand.vmem [shape: f32[1,32], index: 5, kind: input, shape index: {}]
  %s6 = inlined_call_operand.vmem [shape: f32[1,32], index: 6, kind: input, shape index: {}]
  %s7 = inlined_call_operand.vmem [shape: f32[2,64,48], index: 7, kind: input, shape index: {}]
  %s8 = inlined_call_operand.vmem [shape: f32[2,32,48], index: 8, kind: input, shape index: {}]
  %s9 = inlined_call_operand.vmem [shape: f32[2,32,32], index: 9, kind: input, shape index: {}]
  %s10 = inlined_call_operand.vmem [shape: f32[2,1,32], index: 10, kind: input, shape index: {}]
  %s11 = inlined_call_operand.vmem [shape: f32[2,1,32], index: 11, kind: input, shape index: {}]
  %s12 = inlined_call_operand.vmem [shape: f32[2,1,32], index: 12, kind: input, shape index: {}]
  %s13 = inlined_call_operand.vmem [shape: f32[2,32,64], index: 13, kind: input, shape index: {}]
  %s14 = inlined_call_operand.vmem [shape: f32[2,1,64], index: 14, kind: input, shape index: {}]
  %s15 = inlined_call_operand.vmem [shape: f32[2,64,32], index: 15, kind: input, shape index: {}]
  %s16 = inlined_call_operand.vmem [shape: f32[2,1,32], index: 16, kind: input, shape index: {}]
  %s17 = inlined_call_operand.vmem [shape: f32[2,1,32], index: 17, kind: input, shape index: {}]
  %s18 = inlined_call_operand.vmem [shape: f32[2,1,32], index: 18, kind: input, shape index: {}]
  %s19 = inlined_call_operand.vmem [shape: f32[32,128], index: 19, kind: input, shape index: {}]
  %s20 = inlined_call_operand.vmem [shape: f32[1,128], index: 20, kind: input, shape index: {}]
  %s21 = inlined_call_operand.hbm [shape: f32[16,128], index: 21, kind: output, shape index: {}]
  %s22 = sld [smem:[#allocation0]]
  $region94: #{language_model_forward.1} parent=0
    _
  %s24 = ssub.s32 1, %s22
  %s25 = scalar_select 0, %s24, %s22
  $region1: #{language_model_forward.1} parent=0
    #allocation2 [shape = 'u8[8192]{0}', space=vmem, size = 0x2000, scoped, tag = 'output window, operand 0, single buffered']
    #allocation3 [shape = 's32[1]{0}', space=sflag, size = 0x4, scoped, tag = 'scoped memory for language_model_forward.1']
    %26 = vsyncpa [#allocation3], 0
    // Predicated region
    $region2: #{language_model_forward.1} parent=1 // pred_check
      _
    $region3: #{language_model_forward.1} parent=1 // pred_check_branch
      %28 = sbr.rel (0) target = $region5
    $region4: #{language_model_forward.1} parent=1 // pred_region
      _
    $region5: #{language_model_forward.1} parent=1 // pred_fallthru
      _
    // Predicated region
    $region6: #{language_model_forward.1} parent=1 // pred_check
      _
    $region7: #{language_model_forward.1} parent=1 // pred_check_branch
      %30 = sbr.rel (0) target = $region9
    $region8: #{language_model_forward.1} parent=1 // pred_region
      _
    $region9: #{language_model_forward.1} parent=1 // pred_fallthru
      _
    // Predicated region
    $region10: #{language_model_forward.1} parent=1 // pred_check
      _
    $region11: #{language_model_forward.1} parent=1 // pred_check_branch
      %32 = sbr.rel (0) target = $region13
    $region12: #{language_model_forward.1} parent=1 // pred_region
      _
    $region13: #{language_model_forward.1} parent=1 // pred_fallthru
      _
    // Predicated region
    $region14: #{language_model_forward.1} parent=1 // pred_check
      _
    $region15: #{language_model_forward.1} parent=1 // pred_check_branch
      %34 = sbr.rel (0) target = $region17
    $region16: #{language_model_forward.1} parent=1 // pred_region
      _
    $region17: #{language_model_forward.1} parent=1 // pred_fallthru
      _
    // Predicated region
    $region18: #{language_model_forward.1} parent=1 // pred_check
      _
    $region19: #{language_model_forward.1} parent=1 // pred_check_branch
      %36 = sbr.rel (0) target = $region21
    $region20: #{language_model_forward.1} parent=1 // pred_region
      _
    $region21: #{language_model_forward.1} parent=1 // pred_fallthru
      _
    // Predicated region
    $region22: #{language_model_forward.1} parent=1 // pred_check
      _
    $region23: #{language_model_forward.1} parent=1 // pred_check_branch
      %38 = sbr.rel (0) target = $region25
    $region24: #{language_model_forward.1} parent=1 // pred_region
      _
    $region25: #{language_model_forward.1} parent=1 // pred_fallthru
      _
    // Predicated region
    $region26: #{language_model_forward.1} parent=1 // pred_check
      _
    $region27: #{language_model_forward.1} parent=1 // pred_check_branch
      %40 = sbr.rel (0) target = $region29
    $region28: #{language_model_forward.1} parent=1 // pred_region
      _
    $region29: #{language_model_forward.1} parent=1 // pred_fallthru
      _
    // Predicated region
    $region30: #{language_model_forward.1} parent=1 // pred_check
      _
    $region31: #{language_model_forward.1} parent=1 // pred_check_branch
      %42 = sbr.rel (0) target = $region33
    $region32: #{language_model_forward.1} parent=1 // pred_region
      _
    $region33: #{language_model_forward.1} parent=1 // pred_fallthru
      _
    // Predicated region
    $region34: #{language_model_forward.1} parent=1 // pred_check
      _
    $region35: #{language_model_forward.1} parent=1 // pred_check_branch
      %44 = sbr.rel (0) target = $region37
    $region36: #{language_model_forward.1} parent=1 // pred_region
      _
    $region37: #{language_model_forward.1} parent=1 // pred_fallthru
      _
    // Predicated region
    $region38: #{language_model_forward.1} parent=1 // pred_check
      _
    $region39: #{language_model_forward.1} parent=1 // pred_check_branch
      %46 = sbr.rel (0) target = $region41
    $region40: #{language_model_forward.1} parent=1 // pred_region
      _
    $region41: #{language_model_forward.1} parent=1 // pred_fallthru
      _
    // Predicated region
    $region42: #{language_model_forward.1} parent=1 // pred_check
      _
    $region43: #{language_model_forward.1} parent=1 // pred_check_branch
      %48 = sbr.rel (0) target = $region45
    $region44: #{language_model_forward.1} parent=1 // pred_region
      _
    $region45: #{language_model_forward.1} parent=1 // pred_fallthru
      _
    // Predicated region
    $region46: #{language_model_forward.1} parent=1 // pred_check
      _
    $region47: #{language_model_forward.1} parent=1 // pred_check_branch
      %50 = sbr.rel (0) target = $region49
    $region48: #{language_model_forward.1} parent=1 // pred_region
      _
    $region49: #{language_model_forward.1} parent=1 // pred_fallthru
      _
    // Predicated region
    $region50: #{language_model_forward.1} parent=1 // pred_check
      _
    $region51: #{language_model_forward.1} parent=1 // pred_check_branch
      %52 = sbr.rel (0) target = $region53
    $region52: #{language_model_forward.1} parent=1 // pred_region
      _
    $region53: #{language_model_forward.1} parent=1 // pred_fallthru
      _
    // Predicated region
    $region54: #{language_model_forward.1} parent=1 // pred_check
      _
    $region55: #{language_model_forward.1} parent=1 // pred_check_branch
      %54 = sbr.rel (0) target = $region57
    $region56: #{language_model_forward.1} parent=1 // pred_region
      _
    $region57: #{language_model_forward.1} parent=1 // pred_fallthru
      _
    // Predicated region
    $region58: #{language_model_forward.1} parent=1 // pred_check
      _
    $region59: #{language_model_forward.1} parent=1 // pred_check_branch
      %56 = sbr.rel (0) target = $region61
    $region60: #{language_model_forward.1} parent=1 // pred_region
      _
    $region61: #{language_model_forward.1} parent=1 // pred_fallthru
      _
    // Predicated region
    $region62: #{language_model_forward.1} parent=1 // pred_check
      _
    $region63: #{language_model_forward.1} parent=1 // pred_check_branch
      %58 = sbr.rel (0) target = $region65
    $region64: #{language_model_forward.1} parent=1 // pred_region
      _
    $region65: #{language_model_forward.1} parent=1 // pred_fallthru
      _
    // Predicated region
    $region66: #{language_model_forward.1} parent=1 // pred_check
      _
    $region67: #{language_model_forward.1} parent=1 // pred_check_branch
      %60 = sbr.rel (0) target = $region69
    $region68: #{language_model_forward.1} parent=1 // pred_region
      _
    $region69: #{language_model_forward.1} parent=1 // pred_fallthru
      _
    // Predicated region
    $region70: #{language_model_forward.1} parent=1 // pred_check
      _
    $region71: #{language_model_forward.1} parent=1 // pred_check_branch
      %62 = sbr.rel (0) target = $region73
    $region72: #{language_model_forward.1} parent=1 // pred_region
      _
    $region73: #{language_model_forward.1} parent=1 // pred_fallthru
      _
    // Predicated region
    $region74: #{language_model_forward.1} parent=1 // pred_check
      _
    $region75: #{language_model_forward.1} parent=1 // pred_check_branch
      %64 = sbr.rel (0) target = $region77
    $region76: #{language_model_forward.1} parent=1 // pred_region
      _
    $region77: #{language_model_forward.1} parent=1 // pred_fallthru
      _
    // Predicated region
    $region78: #{language_model_forward.1} parent=1 // pred_check
      _
    $region79: #{language_model_forward.1} parent=1 // pred_check_branch
      %66 = sbr.rel (0) target = $region81
    $region80: #{language_model_forward.1} parent=1 // pred_region
      _
    $region81: #{language_model_forward.1} parent=1 // pred_fallthru
      _
    // Predicated region
    $region82: #{language_model_forward.1} parent=1 // pred_check
      _
    $region83: #{language_model_forward.1} parent=1 // pred_check_branch
      %68 = sbr.rel (0) target = $region85
    $region84: #{language_model_forward.1} parent=1 // pred_region
      _
    $region85: #{language_model_forward.1} parent=1 // pred_fallthru
      _
    %v69 = vld [vmem:[%s0] sm:$0xff]
    %v70 = vld [vmem:[%s0 + $0x8] sm:$0xff]
    %v71 = vlaneseq
    %v72 = vand.u32 %v71, 127
    %73 = vset.pattern.permute.xlu0 0
    %74 = vperm.xlu0 %73, %v69
    %v75 = vpop.permute.xlu0 %74
    %76 = vset.pattern.permute.xlu0 0
    %77 = vperm.xlu0 %76, %v70
    %v78 = vpop.permute.xlu0 %77
    %vm79 = vcmp.eq.s32.totalorder %v75, %v72
    %vm80 = vcmp.eq.s32.totalorder %v78, %v72
    %v81 = vsel %vm79, 1, 0
    %v82 = vsel %vm80, 1, 0
    %v83 = vcvt.s32.f32 %v81
    %v84 = vcvt.s32.f32 %v82
    %v85 = vld [vmem:[%s2] sm:$0xff]
    %v86 = vld [vmem:[%s2 + $0x8] sm:$0xff]
    %v87 = vld [vmem:[%s2 + $0x10] sm:$0xff]
    %v88 = vld [vmem:[%s2 + $0x18] sm:$0xff]
    %v89 = vld [vmem:[%s2 + $0x20] sm:$0xff]
    %v90 = vld [vmem:[%s2 + $0x28] sm:$0xff]
    %v91 = vld [vmem:[%s2 + $0x30] sm:$0xff]
    %v92 = vld [vmem:[%s2 + $0x38] sm:$0xff]
    %v93 = vld [vmem:[%s2 + $0x40] sm:$0xff]
    %v94 = vld [vmem:[%s2 + $0x48] sm:$0xff]
    %v95 = vld [vmem:[%s2 + $0x50] sm:$0xff]
    %v96 = vld [vmem:[%s2 + $0x58] sm:$0xff]
    %v97 = vld [vmem:[%s2 + $0x60] sm:$0xff]
    %v98 = vld [vmem:[%s2 + $0x68] sm:$0xff]
    %v99 = vld [vmem:[%s2 + $0x70] sm:$0xff]
    %v100 = vld [vmem:[%s2 + $0x78] sm:$0xff]
    %v101 = vld [vmem:[%s3] sm:$0xff]
    %102 = vmatprep.subr.mxu0 0.0
    %103 = vmatpush1.msra.mxu0 %v85
    %104 = vmatprep.subr.mxu0 0.0
    %105 = vmatpush1.msra.mxu0 %v86
    %106 = vmatprep.subr.mxu0 0.0
    %107 = vmatpush1.msra.mxu0 %v87
    %108 = vmatprep.subr.mxu0 0.0
    %109 = vmatpush1.msra.mxu0 %v88
    %110 = vmatprep.subr.mxu0 0.0
    %111 = vmatpush1.msra.mxu0 %v89
    %112 = vmatprep.subr.mxu0 0.0
    %113 = vmatpush1.msra.mxu0 %v90
    %114 = vmatprep.subr.mxu0 0.0
    %115 = vmatpush1.msra.mxu0 %v91
    %116 = vmatprep.subr.mxu0 0.0
    %117 = vmatpush1.msra.mxu0 %v92
    %118 = vmatprep.subr.mxu0 0.0
    %119 = vmatpush1.msra.mxu0 %v93
    %120 = vmatprep.subr.mxu0 0.0
    %121 = vmatpush1.msra.mxu0 %v94
    %122 = vmatprep.subr.mxu0 0.0
    %123 = vmatpush1.msra.mxu0 %v95
    %124 = vmatprep.subr.mxu0 0.0
    %125 = vmatpush1.msra.mxu0 %v96
    %126 = vmatprep.subr.mxu0 0.0
    %127 = vmatpush1.msra.mxu0 %v97
    %128 = vmatprep.subr.mxu0 0.0
    %129 = vmatpush1.msra.mxu0 %v98
    %130 = vmatprep.subr.mxu0 0.0
    %131 = vmatpush1.msra.mxu0 %v99
    %132 = vmatprep.subr.mxu0 0.0
    %133 = vmatpush1.msra.mxu0 %v100
    %134 = vmatprep.subr.mxu0 0.0
    %135 = vmatpush1.msra.mxu0 0.0
    %136 = vmatprep.subr.mxu0 0.0
    %137 = vmatpush1.msra.mxu0 0.0
    %138 = vmatprep.subr.mxu0 0.0
    %139 = vmatpush1.msra.mxu0 0.0
    %140 = vmatprep.subr.mxu0 0.0
    %141 = vmatpush1.msra.mxu0 0.0
    %142 = vmatprep.subr.mxu0 0.0
    %143 = vmatpush1.msra.mxu0 0.0
    %144 = vmatprep.subr.mxu0 0.0
    %145 = vmatpush1.msra.mxu0 0.0
    %146 = vmatprep.subr.mxu0 0.0
    %147 = vmatpush1.msra.mxu0 0.0
    %148 = vmatprep.subr.mxu0 0.0
    %149 = vmatpush1.msra.mxu0 0.0
    %150 = vmatprep.subr.mxu0 0.0
    %151 = vmatpush1.msra.mxu0 0.0
    %152 = vmatprep.subr.mxu0 0.0
    %153 = vmatpush1.msra.mxu0 0.0
    %154 = vmatprep.subr.mxu0 0.0
    %155 = vmatpush1.msra.mxu0 0.0
    %156 = vmatprep.subr.mxu0 0.0
    %157 = vmatpush1.msra.mxu0 0.0
    %158 = vmatprep.subr.mxu0 0.0
    %159 = vmatpush1.msra.mxu0 0.0
    %160 = vmatprep.subr.mxu0 0.0
    %161 = vmatpush1.msra.mxu0 0.0
    %162 = vmatprep.subr.mxu0 0.0
    %163 = vmatpush1.msra.mxu0 0.0
    %164 = vmatprep.subr.mxu0 0.0
    %165 = vmatpush1.msra.mxu0 0.0
    %166 = vmatprep.mubr.f32.mxu0 0.0
    %167 = vmatmul.mubr.f32.gmra.mrb[0].mxu0 %v83
    %v168 = vpop.f32.mrb[0].mxu0
    %v169 = vadd.f32 %v101, %v168
    %v170 = vpop.f32.mrb[0].mxu0
    %171 = vmatprep.mubr.f32.mxu0 0.0
    %172 = vmatmul.mubr.f32.gmra.mrb[0].mxu0 %v84
    %v173 = vpop.f32.mrb[0].mxu0
    %v174 = vadd.f32 %v101, %v173
    %v175 = vpop.f32.mrb[0].mxu0
    %176 = vdwg.mxu0
    %v177 = vld [vmem:[%s4] sm:$0x1]
    %v178 = vlaneseq
    %v179 = vshrl.u32 %v178, 7
    %v180 = vsub.s32 0, %v179
    %v181 = vrot.slane %v177, %v180
    %v182 = vadd.f32 %v169, %v181
    %v183 = vadd.f32 %v174, %v181
    %v184 = vld [vmem:[%s5] sm:$0x1]
    %v185 = vld [vmem:[%s6] sm:$0x1]
    %vm186 = vcmask 261120
    %v187 = vsel %vm186, %v182, 0.0
    %188 = vadd.xlane.f32.xlu0 %v187
    %v189 = vpop.xlane.xlu0 %188
    %v190 = vsel %vm186, %v183, 0.0
    %191 = vadd.xlane.f32.xlu0 %v190
    %v192 = vpop.xlane.xlu0 %191
    %v193 = vrcp.pop 32.0
    %v194 = vmul.f32 %v189, %v193
    %v195 = vmul.f32 %v192, %v193
    %v196 = vsub.f32 %v182, %v194
    %v197 = vsub.f32 %v183, %v195
    %v198 = vmul.f32 %v196, %v196
    %v199 = vmul.f32 %v197, %v197
    %v200 = vsel %vm186, %v198, 0.0
    %201 = vadd.xlane.f32.xlu0 %v200
    %v202 = vpop.xlane.xlu0 %201
    %v203 = vsel %vm186, %v199, 0.0
    %204 = vadd.xlane.f32.xlu0 %v203
    %v205 = vpop.xlane.xlu0 %204
    %v206 = vmul.f32 %v202, %v193
    %v207 = vmul.f32 %v205, %v193
    %v208 = vadd.f32 %v206, 1e-12
    %v209 = vadd.f32 %v207, 1e-12
    %v210 = vrsqrt.pop %v208
    %v211 = vrsqrt.pop %v209
    %v212 = vmul.f32 %v196, %v210
    %v213 = vmul.f32 %v197, %v211
    %v215 = vlaneseq
    %v216 = vshrl.u32 %v215, 7
    %v217 = vsub.s32 0, %v216
    %v218 = vrot.slane %v184, %v217
    %v220 = vmul.f32 %v212, %v218
    %v221 = vmul.f32 %v213, %v218
    %v223 = vlaneseq
    %v224 = vshrl.u32 %v223, 7
    %v225 = vsub.s32 0, %v224
    %v226 = vrot.slane %v185, %v225
    %v228 = vadd.f32 %v220, %v226
    %v229 = vadd.f32 %v221, %v226
    %v230 = vlaneseq
    %v231 = vshrl.u32 %v230, 7
    %v232 = vadd.s32 %v231, 8
    %v233 = vadd.s32 %v231, 16
    %v234 = vadd.s32 %v231, 24
    %v235 = vand.u32 %v231, 16
    %v236 = vand.u32 %v232, 16
    %v237 = vand.u32 %v233, 16
    %v238 = vand.u32 %v234, 16
    %v239 = vand.u32 %v72, 16
    %vm240 = vcmp.eq.s32.totalorder %v235, %v239
    %vm241 = vcmp.eq.s32.totalorder %v236, %v239
    %vm242 = vcmp.eq.s32.totalorder %v237, %v239
    %vm243 = vcmp.eq.s32.totalorder %v238, %v239
    %v244 = vand.u32 %v231, 8
    %v245 = vand.u32 %v232, 8
    %v246 = vand.u32 %v233, 8
    %v247 = vand.u32 %v234, 8
    %v248 = vand.u32 %v72, 8
    %vm249 = vcmp.eq.s32.totalorder %v244, %v248
    %vm250 = vcmp.eq.s32.totalorder %v245, %v248
    %vm251 = vcmp.eq.s32.totalorder %v246, %v248
    %vm252 = vcmp.eq.s32.totalorder %v247, %v248
    %vm253 = vmand %vm240, %vm249
    %vm254 = vmand %vm241, %vm250
    %vm255 = vmand %vm242, %vm251
    %vm256 = vmand %vm243, %vm252
    %v257 = vsel %vm253, 0.0, -10000.0
    %v258 = vsel %vm254, 0.0, -10000.0
    %v259 = vsel %vm255, 0.0, -10000.0
    %v260 = vsel %vm256, 0.0, -10000.0
    %v261 = vld [vmem:[%s1] sm:$0x1]
    %v263 = vlaneseq
    %v264 = vshrl.u32 %v263, 7
    %v265 = vsub.s32 0, %v264
    %v266 = vrot.slane %v261, %v265
    %267 = vrot.lane.b32.xlu0 %v266, 16
    %v268 = vpop.permute.xlu0 %267
    %vm270 = vcmask 130048
    %v271 = vsel %vm270, %v261, %v268
    %v272 = vsub.f32 1.0, %v271
    %v273 = vmul.f32 %v272, -10000.0
    %v274 = vlaneseq
    %v275 = vshrl.u32 %v274, 7
    %v276 = vsub.s32 0, %v275
    %v277 = vrot.slane %v273, %v276
    %v278 = vadd.f32 %v257, %v277
    %v279 = vadd.f32 %v258, %v277
    %v280 = vadd.f32 %v259, %v277
    %v281 = vadd.f32 %v260, %v277
    %v282 = vsel %vm186, %v228, 0.0
    %v283 = vsel %vm186, %v229, 0.0
    %286 = vrot.lane.b32.xlu0 %v228, 32
    %v287 = vpop.permute.xlu0 %286
    %288 = vrot.lane.b32.xlu0 %v229, 32
    %v289 = vpop.permute.xlu0 %288
    %v292 = vsel %vm186, 0.0, %v287
    %v293 = vsel %vm186, 0.0, %v289
    %v294 = vld [vmem:[%s7] sm:$0xff]
    %v295 = vld [vmem:[%s7 + $0x8] sm:$0xff]
    %v296 = vld [vmem:[%s7 + $0x10] sm:$0xff]
    %v297 = vld [vmem:[%s7 + $0x18] sm:$0xff]
    %v298 = vld [vmem:[%s7 + $0x20] sm:$0xff]
    %v299 = vld [vmem:[%s7 + $0x28] sm:$0xff]
    %v300 = vld [vmem:[%s7 + $0x30] sm:$0xff]
    %v301 = vld [vmem:[%s7 + $0x38] sm:$0xff]
    %v302 = vld [vmem:[%s8] sm:$0xff]
    %v303 = vld [vmem:[%s8 + $0x8] sm:$0xff]
    %v304 = vld [vmem:[%s8 + $0x10] sm:$0xff]
    %v305 = vld [vmem:[%s8 + $0x18] sm:$0xff]
    %vm306 = vcmask 523264
    %v308 = vsel %vm306, %v282, 0
    %v311 = vsel %vm306, %v283, 0
    %v314 = vsel %vm306, %v292, 0
    %v317 = vsel %vm306, %v293, 0
    %319 = vmatprep.subr.mxu0 0.0
    %320 = vmatpush1.msra.mxu0 %v294
    %321 = vmatprep.subr.mxu0 0.0
    %322 = vmatpush1.msra.mxu0 %v295
    %323 = vmatprep.subr.mxu0 0.0
    %324 = vmatpush1.msra.mxu0 %v296
    %325 = vmatprep.subr.mxu0 0.0
    %326 = vmatpush1.msra.mxu0 %v297
    %327 = vmatprep.subr.mxu0 0.0
    %328 = vmatpush1.msra.mxu0 %v298
    %329 = vmatprep.subr.mxu0 0.0
    %330 = vmatpush1.msra.mxu0 %v299
    %331 = vmatprep.subr.mxu0 0.0
    %332 = vmatpush1.msra.mxu0 %v300
    %333 = vmatprep.subr.mxu0 0.0
    %334 = vmatpush1.msra.mxu0 %v301
    %335 = vmatprep.subr.mxu0 0.0
    %336 = vmatpush1.msra.mxu0 0.0
    %337 = vmatprep.subr.mxu0 0.0
    %338 = vmatpush1.msra.mxu0 0.0
    %339 = vmatprep.subr.mxu0 0.0
    %340 = vmatpush1.msra.mxu0 0.0
    %341 = vmatprep.subr.mxu0 0.0
    %342 = vmatpush1.msra.mxu0 0.0
    %343 = vmatprep.subr.mxu0 0.0
    %344 = vmatpush1.msra.mxu0 0.0
    %345 = vmatprep.subr.mxu0 0.0
    %346 = vmatpush1.msra.mxu0 0.0
    %347 = vmatprep.subr.mxu0 0.0
    %348 = vmatpush1.msra.mxu0 0.0
    %349 = vmatprep.subr.mxu0 0.0
    %350 = vmatpush1.msra.mxu0 0.0
    %351 = vmatprep.subr.mxu0 0.0
    %352 = vmatpush1.msra.mxu0 0.0
    %353 = vmatprep.subr.mxu0 0.0
    %354 = vmatpush1.msra.mxu0 0.0
    %355 = vmatprep.subr.mxu0 0.0
    %356 = vmatpush1.msra.mxu0 0.0
    %357 = vmatprep.subr.mxu0 0.0
    %358 = vmatpush1.msra.mxu0 0.0
    %359 = vmatprep.subr.mxu0 0.0
    %360 = vmatpush1.msra.mxu0 0.0
    %361 = vmatprep.subr.mxu0 0.0
    %362 = vmatpush1.msra.mxu0 0.0
    %363 = vmatprep.subr.mxu0 0.0
    %364 = vmatpush1.msra.mxu0 0.0
    %365 = vmatprep.subr.mxu0 0.0
    %366 = vmatpush1.msra.mxu0 0.0
    %367 = vmatprep.subr.mxu0 0.0
    %368 = vmatpush1.msra.mxu0 0.0
    %369 = vmatprep.subr.mxu0 0.0
    %370 = vmatpush1.msra.mxu0 0.0
    %371 = vmatprep.subr.mxu0 0.0
    %372 = vmatpush1.msra.mxu0 0.0
    %373 = vmatprep.subr.mxu0 0.0
    %374 = vmatpush1.msra.mxu0 0.0
    %375 = vmatprep.subr.mxu0 0.0
    %376 = vmatpush1.msra.mxu0 0.0
    %377 = vmatprep.subr.mxu0 0.0
    %378 = vmatpush1.msra.mxu0 0.0
    %379 = vmatprep.subr.mxu0 0.0
    %380 = vmatpush1.msra.mxu0 0.0
    %381 = vmatprep.subr.mxu0 0.0
    %382 = vmatpush1.msra.mxu0 0.0
    %383 = vmatprep.mubr.f32.mxu0 0.0
    %384 = vmatmul.mubr.f32.gmra.mrb[0].mxu0 %v308
    %v385 = vpop.f32.mrb[0].mxu0
    %v386 = vadd.f32 %v302, %v385
    %v387 = vpop.f32.mrb[0].mxu0
    %388 = vmatprep.mubr.f32.mxu0 0.0
    %389 = vmatmul.mubr.f32.gmra.mrb[0].mxu0 %v311
    %v390 = vpop.f32.mrb[0].mxu0
    %v391 = vadd.f32 %v303, %v390
    %v392 = vpop.f32.mrb[0].mxu0
    %393 = vmatprep.mubr.f32.mxu0 0.0
    %394 = vmatmul.mubr.f32.gmra.mrb[0].mxu0 %v314
    %v395 = vpop.f32.mrb[0].mxu0
    %v396 = vadd.f32 %v304, %v395
    %v397 = vpop.f32.mrb[0].mxu0
    %398 = vmatprep.mubr.f32.mxu0 0.0
    %399 = vmatmul.mubr.f32.gmra.mrb[0].mxu0 %v317
    %v400 = vpop.f32.mrb[0].mxu0
    %v401 = vadd.f32 %v305, %v400
    %v402 = vpop.f32.mrb[0].mxu0
    %403 = vdwg.mxu0
    %408 = vrot.lane.b32.xlu0 %v386, 112
    %v409 = vpop.permute.xlu0 %408
    %410 = vrot.lane.b32.xlu0 %v391, 112
    %v411 = vpop.permute.xlu0 %410
    %412 = vrot.lane.b32.xlu0 %v396, 112
    %v413 = vpop.permute.xlu0 %412
    %414 = vrot.lane.b32.xlu0 %v401, 112
    %v415 = vpop.permute.xlu0 %414
    %v416 = vsel %vm270, %v386, 0
    %v418 = vsel %vm270, %v391, 0
    %v420 = vsel %vm270, %v396, 0
    %v422 = vsel %vm270, %v401, 0
    %v424 = vsel %vm270, %v409, 0
    %v426 = vsel %vm270, %v411, 0
    %v428 = vsel %vm270, %v413, 0
    %v430 = vsel %vm270, %v415, 0
    %432 = vmatprep.subr.mxu0 0.0
    %433 = vmatpush1.xpose.msra.mxu0 %v424
    %434 = vmatprep.subr.mxu0 0.0
    %435 = vmatpush1.xpose.msra.mxu0 %v426
    %436 = vmatprep.subr.mxu0 0.0
    %437 = vmatpush1.xpose.msra.mxu0 %v428
    %438 = vmatprep.subr.mxu0 0.0
    %439 = vmatpush1.xpose.msra.mxu0 %v430
    %440 = vmatprep.subr.mxu0 0.0
    %441 = vmatpush1.xpose.msra.mxu0 0.0
    %442 = vmatprep.subr.mxu0 0.0
    %443 = vmatpush1.xpose.msra.mxu0 0.0
    %444 = vmatprep.subr.mxu0 0.0
    %445 = vmatpush1.xpose.msra.mxu0 0.0
    %446 = vmatprep.subr.mxu0 0.0
    %447 = vmatpush1.xpose.msra.mxu0 0.0
    %448 = vmatprep.subr.mxu0 0.0
    %449 = vmatpush1.xpose.msra.mxu0 0.0
    %450 = vmatprep.subr.mxu0 0.0
    %451 = vmatpush1.xpose.msra.mxu0 0.0
    %452 = vmatprep.subr.mxu0 0.0
    %453 = vmatpush1.xpose.msra.mxu0 0.0
    %454 = vmatprep.subr.mxu0 0.0
    %455 = vmatpush1.xpose.msra.mxu0 0.0
    %456 = vmatprep.subr.mxu0 0.0
    %457 = vmatpush1.xpose.msra.mxu0 0.0
    %458 = vmatprep.subr.mxu0 0.0
    %459 = vmatpush1.xpose.msra.mxu0 0.0
    %460 = vmatprep.subr.mxu0 0.0
    %461 = vmatpush1.xpose.msra.mxu0 0.0
    %462 = vmatprep.subr.mxu0 0.0
    %463 = vmatpush1.xpose.msra.mxu0 0.0
    %464 = vmatprep.subr.mxu0 0.0
    %465 = vmatpush1.xpose.msra.mxu0 0.0
    %466 = vmatprep.subr.mxu0 0.0
    %467 = vmatpush1.xpose.msra.mxu0 0.0
    %468 = vmatprep.subr.mxu0 0.0
    %469 = vmatpush1.xpose.msra.mxu0 0.0
    %470 = vmatprep.subr.mxu0 0.0
    %471 = vmatpush1.xpose.msra.mxu0 0.0
    %472 = vmatprep.subr.mxu0 0.0
    %473 = vmatpush1.xpose.msra.mxu0 0.0
    %474 = vmatprep.subr.mxu0 0.0
    %475 = vmatpush1.xpose.msra.mxu0 0.0
    %476 = vmatprep.subr.mxu0 0.0
    %477 = vmatpush1.xpose.msra.mxu0 0.0
    %478 = vmatprep.subr.mxu0 0.0
    %479 = vmatpush1.xpose.msra.mxu0 0.0
    %480 = vmatprep.subr.mxu0 0.0
    %481 = vmatpush1.xpose.msra.mxu0 0.0
    %482 = vmatprep.subr.mxu0 0.0
    %483 = vmatpush1.xpose.msra.mxu0 0.0
    %484 = vmatprep.subr.mxu0 0.0
    %485 = vmatpush1.xpose.msra.mxu0 0.0
    %486 = vmatprep.subr.mxu0 0.0
    %487 = vmatpush1.xpose.msra.mxu0 0.0
    %488 = vmatprep.subr.mxu0 0.0
    %489 = vmatpush1.xpose.msra.mxu0 0.0
    %490 = vmatprep.subr.mxu0 0.0
    %491 = vmatpush1.xpose.msra.mxu0 0.0
    %492 = vmatprep.subr.mxu0 0.0
    %493 = vmatpush1.xpose.msra.mxu0 0.0
    %494 = vmatprep.subr.mxu0 0.0
    %495 = vmatpush1.xpose.msra.mxu0 0.0
    %496 = vmatprep.mubr.f32.mxu0 0.0
    %497 = vmatmul.mubr.f32.gmra.mrb[0].mxu0 %v416
    %v498 = vpop.f32.mrb[0].mxu0
    %v499 = vadd.f32 %v278, %v498
    %v500 = vpop.f32.mrb[0].mxu0
    %501 = vmatprep.mubr.f32.mxu0 0.0
    %502 = vmatmul.mubr.f32.gmra.mrb[0].mxu0 %v418
    %v503 = vpop.f32.mrb[0].mxu0
    %v504 = vadd.f32 %v279, %v503
    %v505 = vpop.f32.mrb[0].mxu0
    %506 = vmatprep.mubr.f32.mxu0 0.0
    %507 = vmatmul.mubr.f32.gmra.mrb[0].mxu0 %v420
    %v508 = vpop.f32.mrb[0].mxu0
    %v509 = vadd.f32 %v280, %v508
    %v510 = vpop.f32.mrb[0].mxu0
    %511 = vmatprep.mubr.f32.mxu0 0.0
    %512 = vmatmul.mubr.f32.gmra.mrb[0].mxu0 %v422
    %v513 = vpop.f32.mrb[0].mxu0
    %v514 = vadd.f32 %v281, %v513
    %v515 = vpop.f32.mrb[0].mxu0
    %516 = vdwg.mxu0
    %v517 = vsel %vm186, %v499, -inf
    %518 = vmax.xlane.f32.xlu0 %v517
    %v519 = vpop.xlane.xlu0 %518
    %v520 = vsel %vm186, %v504, -inf
    %521 = vmax.xlane.f32.xlu0 %v520
    %v522 = vpop.xlane.xlu0 %521
    %v523 = vsel %vm186, %v509, -inf
    %524 = vmax.xlane.f32.xlu0 %v523
    %v525 = vpop.xlane.xlu0 %524
    %v526 = vsel %vm186, %v514, -inf
    %527 = vmax.xlane.f32.xlu0 %v526
    %v528 = vpop.xlane.xlu0 %527
    %v529 = vsub.f32 %v499, %v519
    %v530 = vsub.f32 %v504, %v522
    %v531 = vsub.f32 %v509, %v525
    %v532 = vsub.f32 %v514, %v528
    %v533 = vmul.f32 %v529, 1.442695
    %v534 = vpow.pop %v533
    %v535 = vmul.f32 %v530, 1.442695
    %v536 = vpow.pop %v535
    %v537 = vmul.f32 %v531, 1.442695
    %v538 = vpow.pop %v537
    %v539 = vmul.f32 %v532, 1.442695
    %v540 = vpow.pop %v539
    %v541 = vsel %vm186, %v534, 0.0
    %542 = vadd.xlane.f32.xlu0 %v541
    %v543 = vpop.xlane.xlu0 %542
    %v544 = vsel %vm186, %v536, 0.0
    %545 = vadd.xlane.f32.xlu0 %v544
    %v546 = vpop.xlane.xlu0 %545
    %v547 = vsel %vm186, %v538, 0.0
    %548 = vadd.xlane.f32.xlu0 %v547
    %v549 = vpop.xlane.xlu0 %548
    %v550 = vsel %vm186, %v540, 0.0
    %551 = vadd.xlane.f32.xlu0 %v550
    %v552 = vpop.xlane.xlu0 %551
    %v553 = vrcp.pop %v543
    %v554 = vrcp.pop %v546
    %v555 = vrcp.pop %v549
    %v556 = vrcp.pop %v552
    %v557 = vmul.f32 %v534, %v553
    %v558 = vmul.f32 %v536, %v554
    %v559 = vmul.f32 %v538, %v555
    %v560 = vmul.f32 %v540, %v556
    %561 = vrot.lane.b32.xlu0 %v386, 96
    %v562 = vpop.permute.xlu0 %561
    %563 = vrot.lane.b32.xlu0 %v391, 96
    %v564 = vpop.permute.xlu0 %563
    %565 = vrot.lane.b32.xlu0 %v396, 96
    %v566 = vpop.permute.xlu0 %565
    %567 = vrot.lane.b32.xlu0 %v401, 96
    %v568 = vpop.permute.xlu0 %567
    %v574 = vsel %vm186, %v557, 0
    %v577 = vsel %vm186, %v558, 0
    %v580 = vsel %vm186, %v559, 0
    %v583 = vsel %vm186, %v560, 0
    %585 = vmatprep.subr.mxu0 0.0
    %586 = vmatpush1.msra.mxu0 %v562
    %587 = vmatprep.subr.mxu0 0.0
    %588 = vmatpush1.msra.mxu0 %v564
    %589 = vmatprep.subr.mxu0 0.0
    %590 = vmatpush1.msra.mxu0 %v566
    %591 = vmatprep.subr.mxu0 0.0
    %592 = vmatpush1.msra.mxu0 %v568
    %593 = vmatprep.subr.mxu0 0.0
    %594 = vmatpush1.msra.mxu0 0.0
    %595 = vmatprep.subr.mxu0 0.0
    %596 = vmatpush1.msra.mxu0 0.0
    %597 = vmatprep.subr.mxu0 0.0
    %598 = vmatpush1.msra.mxu0 0.0
    %599 = vmatprep.subr.mxu0 0.0
    %600 = vmatpush1.msra.mxu0 0.0
    %601 = vmatprep.subr.mxu0 0.0
    %602 = vmatpush1.msra.mxu0 0.0
    %603 = vmatprep.subr.mxu0 0.0
    %604 = vmatpush1.msra.mxu0 0.0
    %605 = vmatprep.subr.mxu0 0.0
    %606 = vmatpush1.msra.mxu0 0.0
    %607 = vmatprep.subr.mxu0 0.0
    %608 = vmatpush1.msra.mxu0 0.0
    %609 = vmatprep.subr.mxu0 0.0
    %610 = vmatpush1.msra.mxu0 0.0
    %611 = vmatprep.subr.mxu0 0.0
    %612 = vmatpush1.msra.mxu0 0.0
    %613 = vmatprep.subr.mxu0 0.0
    %614 = vmatpush1.msra.mxu0 0.0
    %615 = vmatprep.subr.mxu0 0.0
    %616 = vmatpush1.msra.mxu0 0.0
    %617 = vmatprep.subr.mxu0 0.0
    %618 = vmatpush1.msra.mxu0 0.0
    %619 = vmatprep.subr.mxu0 0.0
    %620 = vmatpush1.msra.mxu0 0.0
    %621 = vmatprep.subr.mxu0 0.0
    %622 = vmatpush1.msra.mxu0 0.0
    %623 = vmatprep.subr.mxu0 0.0
    %624 = vmatpush1.msra.mxu0 0.0
    %625 = vmatprep.subr.mxu0 0.0
    %626 = vmatpush1.msra.mxu0 0.0
    %627 = vmatprep.subr.mxu0 0.0
    %628 = vmatpush1.msra.mxu0 0.0
    %629 = vmatprep.subr.mxu0 0.0
    %630 = vmatpush1.msra.mxu0 0.0
    %631 = vmatprep.subr.mxu0 0.0
    %632 = vmatpush1.msra.mxu0 0.0
    %633 = vmatprep.subr.mxu0 0.0
    %634 = vmatpush1.msra.mxu0 0.0
    %635 = vmatprep.subr.mxu0 0.0
    %636 = vmatpush1.msra.mxu0 0.0
    %637 = vmatprep.subr.mxu0 0.0
    %638 = vmatpush1.msra.mxu0 0.0
    %639 = vmatprep.subr.mxu0 0.0
    %640 = vmatpush1.msra.mxu0 0.0
    %641 = vmatprep.subr.mxu0 0.0
    %642 = vmatpush1.msra.mxu0 0.0
    %643 = vmatprep.subr.mxu0 0.0
    %644 = vmatpush1.msra.mxu0 0.0
    %645 = vmatprep.subr.mxu0 0.0
    %646 = vmatpush1.msra.mxu0 0.0
    %647 = vmatprep.subr.mxu0 0.0
    %648 = vmatpush1.msra.mxu0 0.0
    %649 = vmatprep.mubr.f32.mxu0 0.0
    %650 = vmatmul.mubr.f32.gmra.mrb[0].mxu0 %v574
    %v651 = vpop.f32.mrb[0].mxu0
    %v652 = vadd.f32 0.0, %v651
    %v653 = vpop.f32.mrb[0].mxu0
    %654 = vmatprep.mubr.f32.mxu0 0.0
    %655 = vmatmul.mubr.f32.gmra.mrb[0].mxu0 %v577
    %v656 = vpop.f32.mrb[0].mxu0
    %v657 = vadd.f32 0.0, %v656
    %v658 = vpop.f32.mrb[0].mxu0
    %659 = vmatprep.mubr.f32.mxu0 0.0
    %660 = vmatmul.mubr.f32.gmra.mrb[0].mxu0 %v580
    %v661 = vpop.f32.mrb[0].mxu0
    %v662 = vadd.f32 0.0, %v661
    %v663 = vpop.f32.mrb[0].mxu0
    %664 = vmatprep.mubr.f32.mxu0 0.0
    %665 = vmatmul.mubr.f32.gmra.mrb[0].mxu0 %v583
    %v666 = vpop.f32.mrb[0].mxu0
    %v667 = vadd.f32 0.0, %v666
    %v668 = vpop.f32.mrb[0].mxu0
    %669 = vdwg.mxu0
    %672 = vrot.lane.b32.xlu0 %v662, 16
    %v673 = vpop.permute.xlu0 %672
    %674 = vrot.lane.b32.xlu0 %v667, 16
    %v675 = vpop.permute.xlu0 %674
    %v678 = vsel %vm270, %v652, %v673
    %v679 = vsel %vm270, %v657, %v675
    %v680 = vld [vmem:[%s9] sm:$0xff]
    %v681 = vld [vmem:[%s9 + $0x8] sm:$0xff]
    %v682 = vld [vmem:[%s9 + $0x10] sm:$0xff]
    %v683 = vld [vmem:[%s9 + $0x18] sm:$0xff]
    %v684 = vld [vmem:[%s10] sm:$0x1]
    %v686 = vlaneseq
    %v687 = vshrl.u32 %v686, 7
    %v688 = vsub.s32 0, %v687
    %v689 = vrot.slane %v684, %v688
    %v692 = vsel %vm186, %v678, 0
    %v695 = vsel %vm186, %v679, 0
    %697 = vmatprep.subr.mxu0 0.0
    %698 = vmatpush1.msra.mxu0 %v680
    %699 = vmatprep.subr.mxu0 0.0
    %700 = vmatpush1.msra.mxu0 %v681
    %701 = vmatprep.subr.mxu0 0.0
    %702 = vmatpush1.msra.mxu0 %v682
    %703 = vmatprep.subr.mxu0 0.0
    %704 = vmatpush1.msra.mxu0 %v683
    %705 = vmatprep.subr.mxu0 0.0
    %706 = vmatpush1.msra.mxu0 0.0
    %707 = vmatprep.subr.mxu0 0.0
    %708 = vmatpush1.msra.mxu0 0.0
    %709 = vmatprep.subr.mxu0 0.0
    %710 = vmatpush1.msra.mxu0 0.0
    %711 = vmatprep.subr.mxu0 0.0
    %712 = vmatpush1.msra.mxu0 0.0
    %713 = vmatprep.subr.mxu0 0.0
    %714 = vmatpush1.msra.mxu0 0.0
    %715 = vmatprep.subr.mxu0 0.0
    %716 = vmatpush1.msra.mxu0 0.0
    %717 = vmatprep.subr.mxu0 0.0
    %718 = vmatpush1.msra.mxu0 0.0
    %719 = vmatprep.subr.mxu0 0.0
    %720 = vmatpush1.msra.mxu0 0.0
    %721 = vmatprep.subr.mxu0 0.0
    %722 = vmatpush1.msra.mxu0 0.0
    %723 = vmatprep.subr.mxu0 0.0
    %724 = vmatpush1.msra.mxu0 0.0
    %725 = vmatprep.subr.mxu0 0.0
    %726 = vmatpush1.msra.mxu0 0.0
    %727 = vmatprep.subr.mxu0 0.0
    %728 = vmatpush1.msra.mxu0 0.0
    %729 = vmatprep.subr.mxu0 0.0
    %730 = vmatpush1.msra.mxu0 0.0
    %731 = vmatprep.subr.mxu0 0.0
    %732 = vmatpush1.msra.mxu0 0.0
    %733 = vmatprep.subr.mxu0 0.0
    %734 = vmatpush1.msra.mxu0 0.0
    %735 = vmatprep.subr.mxu0 0.0
    %736 = vmatpush1.msra.mxu0 0.0
    %737 = vmatprep.subr.mxu0 0.0
    %738 = vmatpush1.msra.mxu0 0.0
    %739 = vmatprep.subr.mxu0 0.0
    %740 = vmatpush1.msra.mxu0 0.0
    %741 = vmatprep.subr.mxu0 0.0
    %742 = vmatpush1.msra.mxu0 0.0
    %743 = vmatprep.subr.mxu0 0.0
    %744 = vmatpush1.msra.mxu0 0.0
    %745 = vmatprep.subr.mxu0 0.0
    %746 = vmatpush1.msra.mxu0 0.0
    %747 = vmatprep.subr.mxu0 0.0
    %748 = vmatpush1.msra.mxu0 0.0
    %749 = vmatprep.subr.mxu0 0.0
    %750 = vmatpush1.msra.mxu0 0.0
    %751 = vmatprep.subr.mxu0 0.0
    %752 = vmatpush1.msra.mxu0 0.0
    %753 = vmatprep.subr.mxu0 0.0
    %754 = vmatpush1.msra.mxu0 0.0
    %755 = vmatprep.subr.mxu0 0.0
    %756 = vmatpush1.msra.mxu0 0.0
    %757 = vmatprep.subr.mxu0 0.0
    %758 = vmatpush1.msra.mxu0 0.0
    %759 = vmatprep.subr.mxu0 0.0
    %760 = vmatpush1.msra.mxu0 0.0
    %761 = vmatprep.mubr.f32.mxu0 0.0
    %762 = vmatmul.mubr.f32.gmra.mrb[0].mxu0 %v692
    %v763 = vpop.f32.mrb[0].mxu0
    %v764 = vadd.f32 %v689, %v763
    %v765 = vpop.f32.mrb[0].mxu0
    %766 = vmatprep.mubr.f32.mxu0 0.0
    %767 = vmatmul.mubr.f32.gmra.mrb[0].mxu0 %v695
    %v768 = vpop.f32.mrb[0].mxu0
    %v769 = vadd.f32 %v689, %v768
    %v770 = vpop.f32.mrb[0].mxu0
    %771 = vdwg.mxu0
    %v772 = vadd.f32 %v228, %v764
    %v773 = vadd.f32 %v229, %v769
    %v774 = vld [vmem:[%s11] sm:$0x1]
    %v775 = vld [vmem:[%s12] sm:$0x1]
    %v776 = vsel %vm186, %v772, 0.0
    %777 = vadd.xlane.f32.xlu0 %v776
    %v778 = vpop.xlane.xlu0 %777
    %v779 = vsel %vm186, %v773, 0.0
    %780 = vadd.xlane.f32.xlu0 %v779
    %v781 = vpop.xlane.xlu0 %780
    %v782 = vmul.f32 %v778, %v193
    %v783 = vmul.f32 %v781, %v193
    %v784 = vsub.f32 %v772, %v782
    %v785 = vsub.f32 %v773, %v783
    %v786 = vmul.f32 %v784, %v784
    %v787 = vmul.f32 %v785, %v785
    %v788 = vsel %vm186, %v786, 0.0
    %789 = vadd.xlane.f32.xlu0 %v788
    %v790 = vpop.xlane.xlu0 %789
    %v791 = vsel %vm186, %v787, 0.0
    %792 = vadd.xlane.f32.xlu0 %v791
    %v793 = vpop.xlane.xlu0 %792
    %v794 = vmul.f32 %v790, %v193
    %v795 = vmul.f32 %v793, %v193
    %v796 = vadd.f32 %v794, 1e-12
    %v797 = vadd.f32 %v795, 1e-12
    %v798 = vrsqrt.pop %v796
    %v799 = vrsqrt.pop %v797
    %v800 = vmul.f32 %v784, %v798
    %v801 = vmul.f32 %v785, %v799
    %v803 = vlaneseq
    %v804 = vshrl.u32 %v803, 7
    %v805 = vsub.s32 0, %v804
    %v806 = vrot.slane %v774, %v805
    %v808 = vmul.f32 %v800, %v806
    %v809 = vmul.f32 %v801, %v806
    %v811 = vlaneseq
    %v812 = vshrl.u32 %v811, 7
    %v813 = vsub.s32 0, %v812
    %v814 = vrot.slane %v775, %v813
    %v816 = vadd.f32 %v808, %v814
    %v817 = vadd.f32 %v809, %v814
    %v818 = vld [vmem:[%s13] sm:$0xff]
    %v819 = vld [vmem:[%s13 + $0x8] sm:$0xff]
    %v820 = vld [vmem:[%s13 + $0x10] sm:$0xff]
    %v821 = vld [vmem:[%s13 + $0x18] sm:$0xff]
    %v822 = vld [vmem:[%s14] sm:$0x1]
    %v824 = vlaneseq
    %v825 = vshrl.u32 %v824, 7
    %v826 = vsub.s32 0, %v825
    %v827 = vrot.slane %v822, %v826
    %v830 = vsel %vm186, %v816, 0
    %v833 = vsel %vm186, %v817, 0
    %835 = vmatprep.subr.mxu0 0.0
    %836 = vmatpush1.msra.mxu0 %v818
    %837 = vmatprep.subr.mxu0 0.0
    %838 = vmatpush1.msra.mxu0 %v819
    %839 = vmatprep.subr.mxu0 0.0
    %840 = vmatpush1.msra.mxu0 %v820
    %841 = vmatprep.subr.mxu0 0.0
    %842 = vmatpush1.msra.mxu0 %v821
    %843 = vmatprep.subr.mxu0 0.0
    %844 = vmatpush1.msra.mxu0 0.0
    %845 = vmatprep.subr.mxu0 0.0
    %846 = vmatpush1.msra.mxu0 0.0
    %847 = vmatprep.subr.mxu0 0.0
    %848 = vmatpush1.msra.mxu0 0.0
    %849 = vmatprep.subr.mxu0 0.0
    %850 = vmatpush1.msra.mxu0 0.0
    %851 = vmatprep.subr.mxu0 0.0
    %852 = vmatpush1.msra.mxu0 0.0
    %853 = vmatprep.subr.mxu0 0.0
    %854 = vmatpush1.msra.mxu0 0.0
    %855 = vmatprep.subr.mxu0 0.0
    %856 = vmatpush1.msra.mxu0 0.0
    %857 = vmatprep.subr.mxu0 0.0
    %858 = vmatpush1.msra.mxu0 0.0
    %859 = vmatprep.subr.mxu0 0.0
    %860 = vmatpush1.msra.mxu0 0.0
    %861 = vmatprep.subr.mxu0 0.0
    %862 = vmatpush1.msra.mxu0 0.0
    %863 = vmatprep.subr.mxu0 0.0
    %864 = vmatpush1.msra.mxu0 0.0
    %865 = vmatprep.subr.mxu0 0.0
    %866 = vmatpush1.msra.mxu0 0.0
    %867 = vmatprep.subr.mxu0 0.0
    %868 = vmatpush1.msra.mxu0 0.0
    %869 = vmatprep.subr.mxu0 0.0
    %870 = vmatpush1.msra.mxu0 0.0
    %871 = vmatprep.subr.mxu0 0.0
    %872 = vmatpush1.msra.mxu0 0.0
    %873 = vmatprep.subr.mxu0 0.0
    %874 = vmatpush1.msra.mxu0 0.0
    %875 = vmatprep.subr.mxu0 0.0
    %876 = vmatpush1.msra.mxu0 0.0
    %877 = vmatprep.subr.mxu0 0.0
    %878 = vmatpush1.msra.mxu0 0.0
    %879 = vmatprep.subr.mxu0 0.0
    %880 = vmatpush1.msra.mxu0 0.0
    %881 = vmatprep.subr.mxu0 0.0
    %882 = vmatpush1.msra.mxu0 0.0
    %883 = vmatprep.subr.mxu0 0.0
    %884 = vmatpush1.msra.mxu0 0.0
    %885 = vmatprep.subr.mxu0 0.0
    %886 = vmatpush1.msra.mxu0 0.0
    %887 = vmatprep.subr.mxu0 0.0
    %888 = vmatpush1.msra.mxu0 0.0
    %889 = vmatprep.subr.mxu0 0.0
    %890 = vmatpush1.msra.mxu0 0.0
    %891 = vmatprep.subr.mxu0 0.0
    %892 = vmatpush1.msra.mxu0 0.0
    %893 = vmatprep.subr.mxu0 0.0
    %894 = vmatpush1.msra.mxu0 0.0
    %895 = vmatprep.subr.mxu0 0.0
    %896 = vmatpush1.msra.mxu0 0.0
    %897 = vmatprep.subr.mxu0 0.0
    %898 = vmatpush1.msra.mxu0 0.0
    %899 = vmatprep.mubr.f32.mxu0 0.0
    %900 = vmatmul.mubr.f32.gmra.mrb[0].mxu0 %v830
    %v901 = vpop.f32.mrb[0].mxu0
    %v902 = vadd.f32 %v827, %v901
    %v903 = vpop.f32.mrb[0].mxu0
    %904 = vmatprep.mubr.f32.mxu0 0.0
    %905 = vmatmul.mubr.f32.gmra.mrb[0].mxu0 %v833
    %v906 = vpop.f32.mrb[0].mxu0
    %v907 = vadd.f32 %v827, %v906
    %v908 = vpop.f32.mrb[0].mxu0
    %909 = vdwg.mxu0
    %v910 = vmul.f32 %v902, 0.5
    %v911 = vmul.f32 %v907, 0.5
    %v912 = vmul.f32 %v902, 0.044715
    %v913 = vmul.f32 %v907, 0.044715
    %v914 = vmul.f32 %v912, %v902
    %v915 = vmul.f32 %v913, %v907
    %v916 = vmul.f32 %v914, %v902
    %v917 = vmul.f32 %v915, %v907
    %v918 = vadd.f32 %v902, %v916
    %v919 = vadd.f32 %v907, %v917
    %v920 = vmul.f32 %v918, 0.7978846
    %v921 = vmul.f32 %v919, 0.7978846
    %v922 = vtanh.pop %v920
    %v923 = vtanh.pop %v921
    %v924 = vadd.f32 %v922, 1.0
    %v925 = vadd.f32 %v923, 1.0
    %v926 = vmul.f32 %v910, %v924
    %v927 = vmul.f32 %v911, %v925
    %v928 = vld [vmem:[%s15] sm:$0xff]
    %v929 = vld [vmem:[%s15 + $0x8] sm:$0xff]
    %v930 = vld [vmem:[%s15 + $0x10] sm:$0xff]
    %v931 = vld [vmem:[%s15 + $0x18] sm:$0xff]
    %v932 = vld [vmem:[%s15 + $0x20] sm:$0xff]
    %v933 = vld [vmem:[%s15 + $0x28] sm:$0xff]
    %v934 = vld [vmem:[%s15 + $0x30] sm:$0xff]
    %v935 = vld [vmem:[%s15 + $0x38] sm:$0xff]
    %v936 = vld [vmem:[%s16] sm:$0x1]
    %v938 = vlaneseq
    %v939 = vshrl.u32 %v938, 7
    %v940 = vsub.s32 0, %v939
    %v941 = vrot.slane %v936, %v940
    %v944 = vsel %vm306, %v926, 0
    %v947 = vsel %vm306, %v927, 0
    %949 = vmatprep.subr.mxu0 0.0
    %950 = vmatpush1.msra.mxu0 %v928
    %951 = vmatprep.subr.mxu0 0.0
    %952 = vmatpush1.msra.mxu0 %v929
    %953 = vmatprep.subr.mxu0 0.0
    %954 = vmatpush1.msra.mxu0 %v930
    %955 = vmatprep.subr.mxu0 0.0
    %956 = vmatpush1.msra.mxu0 %v931
    %957 = vmatprep.subr.mxu0 0.0
    %958 = vmatpush1.msra.mxu0 %v932
    %959 = vmatprep.subr.mxu0 0.0
    %960 = vmatpush1.msra.mxu0 %v933
    %961 = vmatprep.subr.mxu0 0.0
    %962 = vmatpush1.msra.mxu0 %v934
    %963 = vmatprep.subr.mxu0 0.0
    %964 = vmatpush1.msra.mxu0 %v935
    %965 = vmatprep.subr.mxu0 0.0
    %966 = vmatpush1.msra.mxu0 0.0
    %967 = vmatprep.subr.mxu0 0.0
    %968 = vmatpush1.msra.mxu0 0.0
    %969 = vmatprep.subr.mxu0 0.0
    %970 = vmatpush1.msra.mxu0 0.0
    %971 = vmatprep.subr.mxu0 0.0
    %972 = vmatpush1.msra.mxu0 0.0
    %973 = vmatprep.subr.mxu0 0.0
    %974 = vmatpush1.msra.mxu0 0.0
    %975 = vmatprep.subr.mxu0 0.0
    %976 = vmatpush1.msra.mxu0 0.0
    %977 = vmatprep.subr.mxu0 0.0
    %978 = vmatpush1.msra.mxu0 0.0
    %979 = vmatprep.subr.mxu0 0.0
    %980 = vmatpush1.msra.mxu0 0.0
    %981 = vmatprep.subr.mxu0 0.0
    %982 = vmatpush1.msra.mxu0 0.0
    %983 = vmatprep.subr.mxu0 0.0
    %984 = vmatpush1.msra.mxu0 0.0
    %985 = vmatprep.subr.mxu0 0.0
    %986 = vmatpush1.msra.mxu0 0.0
    %987 = vmatprep.subr.mxu0 0.0
    %988 = vmatpush1.msra.mxu0 0.0
    %989 = vmatprep.subr.mxu0 0.0
    %990 = vmatpush1.msra.mxu0 0.0
    %991 = vmatprep.subr.mxu0 0.0
    %992 = vmatpush1.msra.mxu0 0.0
    %993 = vmatprep.subr.mxu0 0.0
    %994 = vmatpush1.msra.mxu0 0.0
    %995 = vmatprep.subr.mxu0 0.0
    %996 = vmatpush1.msra.mxu0 0.0
    %997 = vmatprep.subr.mxu0 0.0
    %998 = vmatpush1.msra.mxu0 0.0
    %999 = vmatprep.subr.mxu0 0.0
    %1000 = vmatpush1.msra.mxu0 0.0
    %1001 = vmatprep.subr.mxu0 0.0
    %1002 = vmatpush1.msra.mxu0 0.0
    %1003 = vmatprep.subr.mxu0 0.0
    %1004 = vmatpush1.msra.mxu0 0.0
    %1005 = vmatprep.subr.mxu0 0.0
    %1006 = vmatpush1.msra.mxu0 0.0
    %1007 = vmatprep.subr.mxu0 0.0
    %1008 = vmatpush1.msra.mxu0 0.0
    %1009 = vmatprep.subr.mxu0 0.0
    %1010 = vmatpush1.msra.mxu0 0.0
    %1011 = vmatprep.subr.mxu0 0.0
    %1012 = vmatpush1.msra.mxu0 0.0
    %1013 = vmatprep.mubr.f32.mxu0 0.0
    %1014 = vmatmul.mubr.f32.gmra.mrb[0].mxu0 %v944
    %v1015 = vpop.f32.mrb[0].mxu0
    %v1016 = vadd.f32 %v941, %v1015
    %v1017 = vpop.f32.mrb[0].mxu0
    %1018 = vmatprep.mubr.f32.mxu0 0.0
    %1019 = vmatmul.mubr.f32.gmra.mrb[0].mxu0 %v947
    %v1020 = vpop.f32.mrb[0].mxu0
    %v1021 = vadd.f32 %v941, %v1020
    %v1022 = vpop.f32.mrb[0].mxu0
    %1023 = vdwg.mxu0
    %v1024 = vadd.f32 %v816, %v1016
    %v1025 = vadd.f32 %v817, %v1021
    %v1026 = vld [vmem:[%s17] sm:$0x1]
    %v1027 = vld [vmem:[%s18] sm:$0x1]
    %v1028 = vsel %vm186, %v1024, 0.0
    %1029 = vadd.xlane.f32.xlu0 %v1028
    %v1030 = vpop.xlane.xlu0 %1029
    %v1031 = vsel %vm186, %v1025, 0.0
    %1032 = vadd.xlane.f32.xlu0 %v1031
    %v1033 = vpop.xlane.xlu0 %1032
    %v1034 = vmul.f32 %v1030, %v193
    %v1035 = vmul.f32 %v1033, %v193
    %v1036 = vsub.f32 %v1024, %v1034
    %v1037 = vsub.f32 %v1025, %v1035
    %v1038 = vmul.f32 %v1036, %v1036
    %v1039 = vmul.f32 %v1037, %v1037
    %v1040 = vsel %vm186, %v1038, 0.0
    %1041 = vadd.xlane.f32.xlu0 %v1040
    %v1042 = vpop.xlane.xlu0 %1041
    %v1043 = vsel %vm186, %v1039, 0.0
    %1044 = vadd.xlane.f32.xlu0 %v1043
    %v1045 = vpop.xlane.xlu0 %1044
    %v1046 = vmul.f32 %v1042, %v193
    %v1047 = vmul.f32 %v1045, %v193
    %v1048 = vadd.f32 %v1046, 1e-12
    %v1049 = vadd.f32 %v1047, 1e-12
    %v1050 = vrsqrt.pop %v1048
    %v1051 = vrsqrt.pop %v1049
    %v1052 = vmul.f32 %v1036, %v1050
    %v1053 = vmul.f32 %v1037, %v1051
    %v1055 = vlaneseq
    %v1056 = vshrl.u32 %v1055, 7
    %v1057 = vsub.s32 0, %v1056
    %v1058 = vrot.slane %v1026, %v1057
    %v1060 = vmul.f32 %v1052, %v1058
    %v1061 = vmul.f32 %v1053, %v1058
    %v1063 = vlaneseq
    %v1064 = vshrl.u32 %v1063, 7
    %v1065 = vsub.s32 0, %v1064
    %v1066 = vrot.slane %v1027, %v1065
    %v1068 = vadd.f32 %v1060, %v1066
    %v1069 = vadd.f32 %v1061, %v1066
    %v1070 = vsel %vm186, %v1068, 0.0
    %v1071 = vsel %vm186, %v1069, 0.0
    %1074 = vrot.lane.b32.xlu0 %v1068, 32
    %v1075 = vpop.permute.xlu0 %1074
    %1076 = vrot.lane.b32.xlu0 %v1069, 32
    %v1077 = vpop.permute.xlu0 %1076
    %v1080 = vsel %vm186, 0.0, %v1075
    %v1081 = vsel %vm186, 0.0, %v1077
    %s1082 = scalar_lea.vmem %s7, 64
    %v1083 = vld [vmem:[%s1082] sm:$0xff]
    %v1084 = vld [vmem:[%s1082 + $0x8] sm:$0xff]
    %v1085 = vld [vmem:[%s1082 + $0x10] sm:$0xff]
    %v1086 = vld [vmem:[%s1082 + $0x18] sm:$0xff]
    %v1087 = vld [vmem:[%s1082 + $0x20] sm:$0xff]
    %v1088 = vld [vmem:[%s1082 + $0x28] sm:$0xff]
    %v1089 = vld [vmem:[%s1082 + $0x30] sm:$0xff]
    %v1090 = vld [vmem:[%s1082 + $0x38] sm:$0xff]
    %s1091 = scalar_lea.vmem %s8, 32
    %v1092 = vld [vmem:[%s1091] sm:$0xff]
    %v1093 = vld [vmem:[%s1091 + $0x8] sm:$0xff]
    %v1094 = vld [vmem:[%s1091 + $0x10] sm:$0xff]
    %v1095 = vld [vmem:[%s1091 + $0x18] sm:$0xff]
    %v1097 = vsel %vm306, %v1070, 0
    %v1100 = vsel %vm306, %v1071, 0
    %v1103 = vsel %vm306, %v1080, 0
    %v1106 = vsel %vm306, %v1081, 0
    %1108 = vmatprep.subr.mxu0 0.0
    %1109 = vmatpush1.msra.mxu0 %v1083
    %1110 = vmatprep.subr.mxu0 0.0
    %1111 = vmatpush1.msra.mxu0 %v1084
    %1112 = vmatprep.subr.mxu0 0.0
    %1113 = vmatpush1.msra.mxu0 %v1085
    %1114 = vmatprep.subr.mxu0 0.0
    %1115 = vmatpush1.msra.mxu0 %v1086
    %1116 = vmatprep.subr.mxu0 0.0
    %1117 = vmatpush1.msra.mxu0 %v1087
    %1118 = vmatprep.subr.mxu0 0.0
    %1119 = vmatpush1.msra.mxu0 %v1088
    %1120 = vmatprep.subr.mxu0 0.0
    %1121 = vmatpush1.msra.mxu0 %v1089
    %1122 = vmatprep.subr.mxu0 0.0
    %1123 = vmatpush1.msra.mxu0 %v1090
    %1124 = vmatprep.subr.mxu0 0.0
    %1125 = vmatpush1.msra.mxu0 0.0
    %1126 = vmatprep.subr.mxu0 0.0
    %1127 = vmatpush1.msra.mxu0 0.0
    %1128 = vmatprep.subr.mxu0 0.0
    %1129 = vmatpush1.msra.mxu0 0.0
    %1130 = vmatprep.subr.mxu0 0.0
    %1131 = vmatpush1.msra.mxu0 0.0
    %1132 = vmatprep.subr.mxu0 0.0
    %1133 = vmatpush1.msra.mxu0 0.0
    %1134 = vmatprep.subr.mxu0 0.0
    %1135 = vmatpush1.msra.mxu0 0.0
    %1136 = vmatprep.subr.mxu0 0.0
    %1137 = vmatpush1.msra.mxu0 0.0
    %1138 = vmatprep.subr.mxu0 0.0
    %1139 = vmatpush1.msra.mxu0 0.0
    %1140 = vmatprep.subr.mxu0 0.0
    %1141 = vmatpush1.msra.mxu0 0.0
    %1142 = vmatprep.subr.mxu0 0.0
    %1143 = vmatpush1.msra.mxu0 0.0
    %1144 = vmatprep.subr.mxu0 0.0
    %1145 = vmatpush1.msra.mxu0 0.0
    %1146 = vmatprep.subr.mxu0 0.0
    %1147 = vmatpush1.msra.mxu0 0.0
    %1148 = vmatprep.subr.mxu0 0.0
    %1149 = vmatpush1.msra.mxu0 0.0
    %1150 = vmatprep.subr.mxu0 0.0
    %1151 = vmatpush1.msra.mxu0 0.0
    %1152 = vmatprep.subr.mxu0 0.0
    %1153 = vmatpush1.msra.mxu0 0.0
    %1154 = vmatprep.subr.mxu0 0.0
    %1155 = vmatpush1.msra.mxu0 0.0
    %1156 = vmatprep.subr.mxu0 0.0
    %1157 = vmatpush1.msra.mxu0 0.0
    %1158 = vmatprep.subr.mxu0 0.0
    %1159 = vmatpush1.msra.mxu0 0.0
    %1160 = vmatprep.subr.mxu0 0.0
    %1161 = vmatpush1.msra.mxu0 0.0
    %1162 = vmatprep.subr.mxu0 0.0
    %1163 = vmatpush1.msra.mxu0 0.0
    %1164 = vmatprep.subr.mxu0 0.0
    %1165 = vmatpush1.msra.mxu0 0.0
    %1166 = vmatprep.subr.mxu0 0.0
    %1167 = vmatpush1.msra.mxu0 0.0
    %1168 = vmatprep.subr.mxu0 0.0
    %1169 = vmatpush1.msra.mxu0 0.0
    %1170 = vmatprep.subr.mxu0 0.0
    %1171 = vmatpush1.msra.mxu0 0.0
    %1172 = vmatprep.mubr.f32.mxu0 0.0
    %1173 = vmatmul.mubr.f32.gmra.mrb[0].mxu0 %v1097
    %v1174 = vpop.f32.mrb[0].mxu0
    %v1175 = vadd.f32 %v1092, %v1174
    %v1176 = vpop.f32.mrb[0].mxu0
    %1177 = vmatprep.mubr.f32.mxu0 0.0
    %1178 = vmatmul.mubr.f32.gmra.mrb[0].mxu0 %v1100
    %v1179 = vpop.f32.mrb[0].mxu0
    %v1180 = vadd.f32 %v1093, %v1179
    %v1181 = vpop.f32.mrb[0].mxu0
    %1182 = vmatprep.mubr.f32.mxu0 0.0
    %1183 = vmatmul.mubr.f32.gmra.mrb[0].mxu0 %v1103
    %v1184 = vpop.f32.mrb[0].mxu0
    %v1185 = vadd.f32 %v1094, %v1184
    %v1186 = vpop.f32.mrb[0].mxu0
    %1187 = vmatprep.mubr.f32.mxu0 0.0
    %1188 = vmatmul.mubr.f32.gmra.mrb[0].mxu0 %v1106
    %v1189 = vpop.f32.mrb[0].mxu0
    %v1190 = vadd.f32 %v1095, %v1189
    %v1191 = vpop.f32.mrb[0].mxu0
    %1192 = vdwg.mxu0
    %1197 = vrot.lane.b32.xlu0 %v1175, 112
    %v1198 = vpop.permute.xlu0 %1197
    %1199 = vrot.lane.b32.xlu0 %v1180, 112
    %v1200 = vpop.permute.xlu0 %1199
    %1201 = vrot.lane.b32.xlu0 %v1185, 112
    %v1202 = vpop.permute.xlu0 %1201
    %1203 = vrot.lane.b32.xlu0 %v1190, 112
    %v1204 = vpop.permute.xlu0 %1203
    %v1205 = vsel %vm270, %v1175, 0
    %v1207 = vsel %vm270, %v1180, 0
    %v1209 = vsel %vm270, %v1185, 0
    %v1211 = vsel %vm270, %v1190, 0
    %v1213 = vsel %vm270, %v1198, 0
    %v1215 = vsel %vm270, %v1200, 0
    %v1217 = vsel %vm270, %v1202, 0
    %v1219 = vsel %vm270, %v1204, 0
    %1221 = vmatprep.subr.mxu0 0.0
    %1222 = vmatpush1.xpose.msra.mxu0 %v1213
    %1223 = vmatprep.subr.mxu0 0.0
    %1224 = vmatpush1.xpose.msra.mxu0 %v1215
    %1225 = vmatprep.subr.mxu0 0.0
    %1226 = vmatpush1.xpose.msra.mxu0 %v1217
    %1227 = vmatprep.subr.mxu0 0.0
    %1228 = vmatpush1.xpose.msra.mxu0 %v1219
    %1229 = vmatprep.subr.mxu0 0.0
    %1230 = vmatpush1.xpose.msra.mxu0 0.0
    %1231 = vmatprep.subr.mxu0 0.0
    %1232 = vmatpush1.xpose.msra.mxu0 0.0
    %1233 = vmatprep.subr.mxu0 0.0
    %1234 = vmatpush1.xpose.msra.mxu0 0.0
    %1235 = vmatprep.subr.mxu0 0.0
    %1236 = vmatpush1.xpose.msra.mxu0 0.0
    %1237 = vmatprep.subr.mxu0 0.0
    %1238 = vmatpush1.xpose.msra.mxu0 0.0
    %1239 = vmatprep.subr.mxu0 0.0
    %1240 = vmatpush1.xpose.msra.mxu0 0.0
    %1241 = vmatprep.subr.mxu0 0.0
    %1242 = vmatpush1.xpose.msra.mxu0 0.0
    %1243 = vmatprep.subr.mxu0 0.0
    %1244 = vmatpush1.xpose.msra.mxu0 0.0
    %1245 = vmatprep.subr.mxu0 0.0
    %1246 = vmatpush1.xpose.msra.mxu0 0.0
    %1247 = vmatprep.subr.mxu0 0.0
    %1248 = vmatpush1.xpose.msra.mxu0 0.0
    %1249 = vmatprep.subr.mxu0 0.0
    %1250 = vmatpush1.xpose.msra.mxu0 0.0
    %1251 = vmatprep.subr.mxu0 0.0
    %1252 = vmatpush1.xpose.msra.mxu0 0.0
    %1253 = vmatprep.subr.mxu0 0.0
    %1254 = vmatpush1.xpose.msra.mxu0 0.0
    %1255 = vmatprep.subr.mxu0 0.0
    %1256 = vmatpush1.xpose.msra.mxu0 0.0
    %1257 = vmatprep.subr.mxu0 0.0
    %1258 = vmatpush1.xpose.msra.mxu0 0.0
    %1259 = vmatprep.subr.mxu0 0.0
    %1260 = vmatpush1.xpose.msra.mxu0 0.0
    %1261 = vmatprep.subr.mxu0 0.0
    %1262 = vmatpush1.xpose.msra.mxu0 0.0
    %1263 = vmatprep.subr.mxu0 0.0
    %1264 = vmatpush1.xpose.msra.mxu0 0.0
    %1265 = vmatprep.subr.mxu0 0.0
    %1266 = vmatpush1.xpose.msra.mxu0 0.0
    %1267 = vmatprep.subr.mxu0 0.0
    %1268 = vmatpush1.xpose.msra.mxu0 0.0
    %1269 = vmatprep.subr.mxu0 0.0
    %1270 = vmatpush1.xpose.msra.mxu0 0.0
    %1271 = vmatprep.subr.mxu0 0.0
    %1272 = vmatpush1.xpose.msra.mxu0 0.0
    %1273 = vmatprep.subr.mxu0 0.0
    %1274 = vmatpush1.xpose.msra.mxu0 0.0
    %1275 = vmatprep.subr.mxu0 0.0
    %1276 = vmatpush1.xpose.msra.mxu0 0.0
    %1277 = vmatprep.subr.mxu0 0.0
    %1278 = vmatpush1.xpose.msra.mxu0 0.0
    %1279 = vmatprep.subr.mxu0 0.0
    %1280 = vmatpush1.xpose.msra.mxu0 0.0
    %1281 = vmatprep.subr.mxu0 0.0
    %1282 = vmatpush1.xpose.msra.mxu0 0.0
    %1283 = vmatprep.subr.mxu0 0.0
    %1284 = vmatpush1.xpose.msra.mxu0 0.0
    %1285 = vmatprep.mubr.f32.mxu0 0.0
    %1286 = vmatmul.mubr.f32.gmra.mrb[0].mxu0 %v1205
    %v1287 = vpop.f32.mrb[0].mxu0
    %v1288 = vadd.f32 %v278, %v1287
    %v1289 = vpop.f32.mrb[0].mxu0
    %1290 = vmatprep.mubr.f32.mxu0 0.0
    %1291 = vmatmul.mubr.f32.gmra.mrb[0].mxu0 %v1207
    %v1292 = vpop.f32.mrb[0].mxu0
    %v1293 = vadd.f32 %v279, %v1292
    %v1294 = vpop.f32.mrb[0].mxu0
    %1295 = vmatprep.mubr.f32.mxu0 0.0
    %1296 = vmatmul.mubr.f32.gmra.mrb[0].mxu0 %v1209
    %v1297 = vpop.f32.mrb[0].mxu0
    %v1298 = vadd.f32 %v280, %v1297
    %v1299 = vpop.f32.mrb[0].mxu0
    %1300 = vmatprep.mubr.f32.mxu0 0.0
    %1301 = vmatmul.mubr.f32.gmra.mrb[0].mxu0 %v1211
    %v1302 = vpop.f32.mrb[0].mxu0
    %v1303 = vadd.f32 %v281, %v1302
    %v1304 = vpop.f32.mrb[0].mxu0
    %1305 = vdwg.mxu0
    %v1306 = vsel %vm186, %v1288, -inf
    %1307 = vmax.xlane.f32.xlu0 %v1306
    %v1308 = vpop.xlane.xlu0 %1307
    %v1309 = vsel %vm186, %v1293, -inf
    %1310 = vmax.xlane.f32.xlu0 %v1309
    %v1311 = vpop.xlane.xlu0 %1310
    %v1312 = vsel %vm186, %v1298, -inf
    %1313 = vmax.xlane.f32.xlu0 %v1312
    %v1314 = vpop.xlane.xlu0 %1313
    %v1315 = vsel %vm186, %v1303, -inf
    %1316 = vmax.xlane.f32.xlu0 %v1315
    %v1317 = vpop.xlane.xlu0 %1316
    %v1318 = vsub.f32 %v1288, %v1308
    %v1319 = vsub.f32 %v1293, %v1311
    %v1320 = vsub.f32 %v1298, %v1314
    %v1321 = vsub.f32 %v1303, %v1317
    %v1322 = vmul.f32 %v1318, 1.442695
    %v1323 = vpow.pop %v1322
    %v1324 = vmul.f32 %v1319, 1.442695
    %v1325 = vpow.pop %v1324
    %v1326 = vmul.f32 %v1320, 1.442695
    %v1327 = vpow.pop %v1326
    %v1328 = vmul.f32 %v1321, 1.442695
    %v1329 = vpow.pop %v1328
    %v1330 = vsel %vm186, %v1323, 0.0
    %1331 = vadd.xlane.f32.xlu0 %v1330
    %v1332 = vpop.xlane.xlu0 %1331
    %v1333 = vsel %vm186, %v1325, 0.0
    %1334 = vadd.xlane.f32.xlu0 %v1333
    %v1335 = vpop.xlane.xlu0 %1334
    %v1336 = vsel %vm186, %v1327, 0.0
    %1337 = vadd.xlane.f32.xlu0 %v1336
    %v1338 = vpop.xlane.xlu0 %1337
    %v1339 = vsel %vm186, %v1329, 0.0
    %1340 = vadd.xlane.f32.xlu0 %v1339
    %v1341 = vpop.xlane.xlu0 %1340
    %v1342 = vrcp.pop %v1332
    %v1343 = vrcp.pop %v1335
    %v1344 = vrcp.pop %v1338
    %v1345 = vrcp.pop %v1341
    %v1346 = vmul.f32 %v1323, %v1342
    %v1347 = vmul.f32 %v1325, %v1343
    %v1348 = vmul.f32 %v1327, %v1344
    %v1349 = vmul.f32 %v1329, %v1345
    %1350 = vrot.lane.b32.xlu0 %v1175, 96
    %v1351 = vpop.permute.xlu0 %1350
    %1352 = vrot.lane.b32.xlu0 %v1180, 96
    %v1353 = vpop.permute.xlu0 %1352
    %1354 = vrot.lane.b32.xlu0 %v1185, 96
    %v1355 = vpop.permute.xlu0 %1354
    %1356 = vrot.lane.b32.xlu0 %v1190, 96
    %v1357 = vpop.permute.xlu0 %1356
    %v1363 = vsel %vm186, %v1346, 0
    %v1366 = vsel %vm186, %v1347, 0
    %v1369 = vsel %vm186, %v1348, 0
    %v1372 = vsel %vm186, %v1349, 0
    %1374 = vmatprep.subr.mxu0 0.0
    %1375 = vmatpush1.msra.mxu0 %v1351
    %1376 = vmatprep.subr.mxu0 0.0
    %1377 = vmatpush1.msra.mxu0 %v1353
    %1378 = vmatprep.subr.mxu0 0.0
    %1379 = vmatpush1.msra.mxu0 %v1355
    %1380 = vmatprep.subr.mxu0 0.0
    %1381 = vmatpush1.msra.mxu0 %v1357
    %1382 = vmatprep.subr.mxu0 0.0
    %1383 = vmatpush1.msra.mxu0 0.0
    %1384 = vmatprep.subr.mxu0 0.0
    %1385 = vmatpush1.msra.mxu0 0.0
    %1386 = vmatprep.subr.mxu0 0.0
    %1387 = vmatpush1.msra.mxu0 0.0
    %1388 = vmatprep.subr.mxu0 0.0
    %1389 = vmatpush1.msra.mxu0 0.0
    %1390 = vmatprep.subr.mxu0 0.0
    %1391 = vmatpush1.msra.mxu0 0.0
    %1392 = vmatprep.subr.mxu0 0.0
    %1393 = vmatpush1.msra.mxu0 0.0
    %1394 = vmatprep.subr.mxu0 0.0
    %1395 = vmatpush1.msra.mxu0 0.0
    %1396 = vmatprep.subr.mxu0 0.0
    %1397 = vmatpush1.msra.mxu0 0.0
    %1398 = vmatprep.subr.mxu0 0.0
    %1399 = vmatpush1.msra.mxu0 0.0
    %1400 = vmatprep.subr.mxu0 0.0
    %1401 = vmatpush1.msra.mxu0 0.0
    %1402 = vmatprep.subr.mxu0 0.0
    %1403 = vmatpush1.msra.mxu0 0.0
    %1404 = vmatprep.subr.mxu0 0.0
    %1405 = vmatpush1.msra.mxu0 0.0
    %1406 = vmatprep.subr.mxu0 0.0
    %1407 = vmatpush1.msra.mxu0 0.0
    %1408 = vmatprep.subr.mxu0 0.0
    %1409 = vmatpush1.msra.mxu0 0.0
    %1410 = vmatprep.subr.mxu0 0.0
    %1411 = vmatpush1.msra.mxu0 0.0
    %1412 = vmatprep.subr.mxu0 0.0
    %1413 = vmatpush1.msra.mxu0 0.0
    %1414 = vmatprep.subr.mxu0 0.0
    %1415 = vmatpush1.msra.mxu0 0.0
    %1416 = vmatprep.subr.mxu0 0.0
    %1417 = vmatpush1.msra.mxu0 0.0
    %1418 = vmatprep.subr.mxu0 0.0
    %1419 = vmatpush1.msra.mxu0 0.0
    %1420 = vmatprep.subr.mxu0 0.0
    %1421 = vmatpush1.msra.mxu0 0.0
    %1422 = vmatprep.subr.mxu0 0.0
    %1423 = vmatpush1.msra.mxu0 0.0
    %1424 = vmatprep.subr.mxu0 0.0
    %1425 = vmatpush1.msra.mxu0 0.0
    %1426 = vmatprep.subr.mxu0 0.0
    %1427 = vmatpush1.msra.mxu0 0.0
    %1428 = vmatprep.subr.mxu0 0.0
    %1429 = vmatpush1.msra.mxu0 0.0
    %1430 = vmatprep.subr.mxu0 0.0
    %1431 = vmatpush1.msra.mxu0 0.0
    %1432 = vmatprep.subr.mxu0 0.0
    %1433 = vmatpush1.msra.mxu0 0.0
    %1434 = vmatprep.subr.mxu0 0.0
    %1435 = vmatpush1.msra.mxu0 0.0
    %1436 = vmatprep.subr.mxu0 0.0
    %1437 = vmatpush1.msra.mxu0 0.0
    %1438 = vmatprep.mubr.f32.mxu0 0.0
    %1439 = vmatmul.mubr.f32.gmra.mrb[0].mxu0 %v1363
    %v1440 = vpop.f32.mrb[0].mxu0
    %v1441 = vadd.f32 0.0, %v1440
    %v1442 = vpop.f32.mrb[0].mxu0
    %1443 = vmatprep.mubr.f32.mxu0 0.0
    %1444 = vmatmul.mubr.f32.gmra.mrb[0].mxu0 %v1366
    %v1445 = vpop.f32.mrb[0].mxu0
    %v1446 = vadd.f32 0.0, %v1445
    %v1447 = vpop.f32.mrb[0].mxu0
    %1448 = vmatprep.mubr.f32.mxu0 0.0
    %1449 = vmatmul.mubr.f32.gmra.mrb[0].mxu0 %v1369
    %v1450 = vpop.f32.mrb[0].mxu0
    %v1451 = vadd.f32 0.0, %v1450
    %v1452 = vpop.f32.mrb[0].mxu0
    %1453 = vmatprep.mubr.f32.mxu0 0.0
    %1454 = vmatmul.mubr.f32.gmra.mrb[0].mxu0 %v1372
    %v1455 = vpop.f32.mrb[0].mxu0
    %v1456 = vadd.f32 0.0, %v1455
    %v1457 = vpop.f32.mrb[0].mxu0
    %1458 = vdwg.mxu0
    %1461 = vrot.lane.b32.xlu0 %v1451, 16
    %v1462 = vpop.permute.xlu0 %1461
    %1463 = vrot.lane.b32.xlu0 %v1456, 16
    %v1464 = vpop.permute.xlu0 %1463
    %v1467 = vsel %vm270, %v1441, %v1462
    %v1468 = vsel %vm270, %v1446, %v1464
    %s1469 = scalar_lea.vmem %s9, 32
    %v1470 = vld [vmem:[%s1469] sm:$0xff]
    %v1471 = vld [vmem:[%s1469 + $0x8] sm:$0xff]
    %v1472 = vld [vmem:[%s1469 + $0x10] sm:$0xff]
    %v1473 = vld [vmem:[%s1469 + $0x18] sm:$0xff]
    %s1474 = scalar_lea.vmem %s10, 1
    %v1475 = vld [vmem:[%s1474] sm:$0x1]
    %v1477 = vlaneseq
    %v1478 = vshrl.u32 %v1477, 7
    %v1479 = vsub.s32 0, %v1478
    %v1480 = vrot.slane %v1475, %v1479
    %v1483 = vsel %vm186, %v1467, 0
    %v1486 = vsel %vm186, %v1468, 0
    %1488 = vmatprep.subr.mxu0 0.0
    %1489 = vmatpush1.msra.mxu0 %v1470
    %1490 = vmatprep.subr.mxu0 0.0
    %1491 = vmatpush1.msra.mxu0 %v1471
    %1492 = vmatprep.subr.mxu0 0.0
    %1493 = vmatpush1.msra.mxu0 %v1472
    %1494 = vmatprep.subr.mxu0 0.0
    %1495 = vmatpush1.msra.mxu0 %v1473
    %1496 = vmatprep.subr.mxu0 0.0
    %1497 = vmatpush1.msra.mxu0 0.0
    %1498 = vmatprep.subr.mxu0 0.0
    %1499 = vmatpush1.msra.mxu0 0.0
    %1500 = vmatprep.subr.mxu0 0.0
    %1501 = vmatpush1.msra.mxu0 0.0
    %1502 = vmatprep.subr.mxu0 0.0
    %1503 = vmatpush1.msra.mxu0 0.0
    %1504 = vmatprep.subr.mxu0 0.0
    %1505 = vmatpush1.msra.mxu0 0.0
    %1506 = vmatprep.subr.mxu0 0.0
    %1507 = vmatpush1.msra.mxu0 0.0
    %1508 = vmatprep.subr.mxu0 0.0
    %1509 = vmatpush1.msra.mxu0 0.0
    %1510 = vmatprep.subr.mxu0 0.0
    %1511 = vmatpush1.msra.mxu0 0.0
    %1512 = vmatprep.subr.mxu0 0.0
    %1513 = vmatpush1.msra.mxu0 0.0
    %1514 = vmatprep.subr.mxu0 0.0
    %1515 = vmatpush1.msra.mxu0 0.0
    %1516 = vmatprep.subr.mxu0 0.0
    %1517 = vmatpush1.msra.mxu0 0.0
    %1518 = vmatprep.subr.mxu0 0.0
    %1519 = vmatpush1.msra.mxu0 0.0
    %1520 = vmatprep.subr.mxu0 0.0
    %1521 = vmatpush1.msra.mxu0 0.0
    %1522 = vmatprep.subr.mxu0 0.0
    %1523 = vmatpush1.msra.mxu0 0.0
    %1524 = vmatprep.subr.mxu0 0.0
    %1525 = vmatpush1.msra.mxu0 0.0
    %1526 = vmatprep.subr.mxu0 0.0
    %1527 = vmatpush1.msra.mxu0 0.0
    %1528 = vmatprep.subr.mxu0 0.0
    %1529 = vmatpush1.msra.mxu0 0.0
    %1530 = vmatprep.subr.mxu0 0.0
    %1531 = vmatpush1.msra.mxu0 0.0
    %1532 = vmatprep.subr.mxu0 0.0
    %1533 = vmatpush1.msra.mxu0 0.0
    %1534 = vmatprep.subr.mxu0 0.0
    %1535 = vmatpush1.msra.mxu0 0.0
    %1536 = vmatprep.subr.mxu0 0.0
    %1537 = vmatpush1.msra.mxu0 0.0
    %1538 = vmatprep.subr.mxu0 0.0
    %1539 = vmatpush1.msra.mxu0 0.0
    %1540 = vmatprep.subr.mxu0 0.0
    %1541 = vmatpush1.msra.mxu0 0.0
    %1542 = vmatprep.subr.mxu0 0.0
    %1543 = vmatpush1.msra.mxu0 0.0
    %1544 = vmatprep.subr.mxu0 0.0
    %1545 = vmatpush1.msra.mxu0 0.0
    %1546 = vmatprep.subr.mxu0 0.0
    %1547 = vmatpush1.msra.mxu0 0.0
    %1548 = vmatprep.subr.mxu0 0.0
    %1549 = vmatpush1.msra.mxu0 0.0
    %1550 = vmatprep.subr.mxu0 0.0
    %1551 = vmatpush1.msra.mxu0 0.0
    %1552 = vmatprep.mubr.f32.mxu0 0.0
    %1553 = vmatmul.mubr.f32.gmra.mrb[0].mxu0 %v1483
    %v1554 = vpop.f32.mrb[0].mxu0
    %v1555 = vadd.f32 %v1480, %v1554
    %v1556 = vpop.f32.mrb[0].mxu0
    %1557 = vmatprep.mubr.f32.mxu0 0.0
    %1558 = vmatmul.mubr.f32.gmra.mrb[0].mxu0 %v1486
    %v1559 = vpop.f32.mrb[0].mxu0
    %v1560 = vadd.f32 %v1480, %v1559
    %v1561 = vpop.f32.mrb[0].mxu0
    %1562 = vdwg.mxu0
    %v1563 = vadd.f32 %v1068, %v1555
    %v1564 = vadd.f32 %v1069, %v1560
    %s1565 = scalar_lea.vmem %s11, 1
    %v1566 = vld [vmem:[%s1565] sm:$0x1]
    %s1567 = scalar_lea.vmem %s12, 1
    %v1568 = vld [vmem:[%s1567] sm:$0x1]
    %v1569 = vsel %vm186, %v1563, 0.0
    %1570 = vadd.xlane.f32.xlu0 %v1569
    %v1571 = vpop.xlane.xlu0 %1570
    %v1572 = vsel %vm186, %v1564, 0.0
    %1573 = vadd.xlane.f32.xlu0 %v1572
    %v1574 = vpop.xlane.xlu0 %1573
    %v1575 = vmul.f32 %v1571, %v193
    %v1576 = vmul.f32 %v1574, %v193
    %v1577 = vsub.f32 %v1563, %v1575
    %v1578 = vsub.f32 %v1564, %v1576
    %v1579 = vmul.f32 %v1577, %v1577
    %v1580 = vmul.f32 %v1578, %v1578
    %v1581 = vsel %vm186, %v1579, 0.0
    %1582 = vadd.xlane.f32.xlu0 %v1581
    %v1583 = vpop.xlane.xlu0 %1582
    %v1584 = vsel %vm186, %v1580, 0.0
    %1585 = vadd.xlane.f32.xlu0 %v1584
    %v1586 = vpop.xlane.xlu0 %1585
    %v1587 = vmul.f32 %v1583, %v193
    %v1588 = vmul.f32 %v1586, %v193
    %v1589 = vadd.f32 %v1587, 1e-12
    %v1590 = vadd.f32 %v1588, 1e-12
    %v1591 = vrsqrt.pop %v1589
    %v1592 = vrsqrt.pop %v1590
    %v1593 = vmul.f32 %v1577, %v1591
    %v1594 = vmul.f32 %v1578, %v1592
    %v1596 = vlaneseq
    %v1597 = vshrl.u32 %v1596, 7
    %v1598 = vsub.s32 0, %v1597
    %v1599 = vrot.slane %v1566, %v1598
    %v1601 = vmul.f32 %v1593, %v1599
    %v1602 = vmul.f32 %v1594, %v1599
    %v1604 = vlaneseq
    %v1605 = vshrl.u32 %v1604, 7
    %v1606 = vsub.s32 0, %v1605
    %v1607 = vrot.slane %v1568, %v1606
    %v1609 = vadd.f32 %v1601, %v1607
    %v1610 = vadd.f32 %v1602, %v1607
    %s1611 = scalar_lea.vmem %s13, 32
    %v1612 = vld [vmem:[%s1611] sm:$0xff]
    %v1613 = vld [vmem:[%s1611 + $0x8] sm:$0xff]
    %v1614 = vld [vmem:[%s1611 + $0x10] sm:$0xff]
    %v1615 = vld [vmem:[%s1611 + $0x18] sm:$0xff]
    %s1616 = scalar_lea.vmem %s14, 1
    %v1617 = vld [vmem:[%s1616] sm:$0x1]
    %v1619 = vlaneseq
    %v1620 = vshrl.u32 %v1619, 7
    %v1621 = vsub.s32 0, %v1620
    %v1622 = vrot.slane %v1617, %v1621
    %v1625 = vsel %vm186, %v1609, 0
    %v1628 = vsel %vm186, %v1610, 0
    %1630 = vmatprep.subr.mxu0 0.0
    %1631 = vmatpush1.msra.mxu0 %v1612
    %1632 = vmatprep.subr.mxu0 0.0
    %1633 = vmatpush1.msra.mxu0 %v1613
    %1634 = vmatprep.subr.mxu0 0.0
    %1635 = vmatpush1.msra.mxu0 %v1614
    %1636 = vmatprep.subr.mxu0 0.0
    %1637 = vmatpush1.msra.mxu0 %v1615
    %1638 = vmatprep.subr.mxu0 0.0
    %1639 = vmatpush1.msra.mxu0 0.0
    %1640 = vmatprep.subr.mxu0 0.0
    %1641 = vmatpush1.msra.mxu0 0.0
    %1642 = vmatprep.subr.mxu0 0.0
    %1643 = vmatpush1.msra.mxu0 0.0
    %1644 = vmatprep.subr.mxu0 0.0
    %1645 = vmatpush1.msra.mxu0 0.0
    %1646 = vmatprep.subr.mxu0 0.0
    %1647 = vmatpush1.msra.mxu0 0.0
    %1648 = vmatprep.subr.mxu0 0.0
    %1649 = vmatpush1.msra.mxu0 0.0
    %1650 = vmatprep.subr.mxu0 0.0
    %1651 = vmatpush1.msra.mxu0 0.0
    %1652 = vmatprep.subr.mxu0 0.0
    %1653 = vmatpush1.msra.mxu0 0.0
    %1654 = vmatprep.subr.mxu0 0.0
    %1655 = vmatpush1.msra.mxu0 0.0
    %1656 = vmatprep.subr.mxu0 0.0
    %1657 = vmatpush1.msra.mxu0 0.0
    %1658 = vmatprep.subr.mxu0 0.0
    %1659 = vmatpush1.msra.mxu0 0.0
    %1660 = vmatprep.subr.mxu0 0.0
    %1661 = vmatpush1.msra.mxu0 0.0
    %1662 = vmatprep.subr.mxu0 0.0
    %1663 = vmatpush1.msra.mxu0 0.0
    %1664 = vmatprep.subr.mxu0 0.0
    %1665 = vmatpush1.msra.mxu0 0.0
    %1666 = vmatprep.subr.mxu0 0.0
    %1667 = vmatpush1.msra.mxu0 0.0
    %1668 = vmatprep.subr.mxu0 0.0
    %1669 = vmatpush1.msra.mxu0 0.0
    %1670 = vmatprep.subr.mxu0 0.0
    %1671 = vmatpush1.msra.mxu0 0.0
    %1672 = vmatprep.subr.mxu0 0.0
    %1673 = vmatpush1.msra.mxu0 0.0
    %1674 = vmatprep.subr.mxu0 0.0
    %1675 = vmatpush1.msra.mxu0 0.0
    %1676 = vmatprep.subr.mxu0 0.0
    %1677 = vmatpush1.msra.mxu0 0.0
    %1678 = vmatprep.subr.mxu0 0.0
    %1679 = vmatpush1.msra.mxu0 0.0
    %1680 = vmatprep.subr.mxu0 0.0
    %1681 = vmatpush1.msra.mxu0 0.0
    %1682 = vmatprep.subr.mxu0 0.0
    %1683 = vmatpush1.msra.mxu0 0.0
    %1684 = vmatprep.subr.mxu0 0.0
    %1685 = vmatpush1.msra.mxu0 0.0
    %1686 = vmatprep.subr.mxu0 0.0
    %1687 = vmatpush1.msra.mxu0 0.0
    %1688 = vmatprep.subr.mxu0 0.0
    %1689 = vmatpush1.msra.mxu0 0.0
    %1690 = vmatprep.subr.mxu0 0.0
    %1691 = vmatpush1.msra.mxu0 0.0
    %1692 = vmatprep.subr.mxu0 0.0
    %1693 = vmatpush1.msra.mxu0 0.0
    %1694 = vmatprep.mubr.f32.mxu0 0.0
    %1695 = vmatmul.mubr.f32.gmra.mrb[0].mxu0 %v1625
    %v1696 = vpop.f32.mrb[0].mxu0
    %v1697 = vadd.f32 %v1622, %v1696
    %v1698 = vpop.f32.mrb[0].mxu0
    %1699 = vmatprep.mubr.f32.mxu0 0.0
    %1700 = vmatmul.mubr.f32.gmra.mrb[0].mxu0 %v1628
    %v1701 = vpop.f32.mrb[0].mxu0
    %v1702 = vadd.f32 %v1622, %v1701
    %v1703 = vpop.f32.mrb[0].mxu0
    %1704 = vdwg.mxu0
    %v1705 = vmul.f32 %v1697, 0.5
    %v1706 = vmul.f32 %v1702, 0.5
    %v1707 = vmul.f32 %v1697, 0.044715
    %v1708 = vmul.f32 %v1702, 0.044715
    %v1709 = vmul.f32 %v1707, %v1697
    %v1710 = vmul.f32 %v1708, %v1702
    %v1711 = vmul.f32 %v1709, %v1697
    %v1712 = vmul.f32 %v1710, %v1702
    %v1713 = vadd.f32 %v1697, %v1711
    %v1714 = vadd.f32 %v1702, %v1712
    %v1715 = vmul.f32 %v1713, 0.7978846
    %v1716 = vmul.f32 %v1714, 0.7978846
    %v1717 = vtanh.pop %v1715
    %v1718 = vtanh.pop %v1716
    %v1719 = vadd.f32 %v1717, 1.0
    %v1720 = vadd.f32 %v1718, 1.0
    %v1721 = vmul.f32 %v1705, %v1719
    %v1722 = vmul.f32 %v1706, %v1720
    %s1723 = scalar_lea.vmem %s15, 64
    %v1724 = vld [vmem:[%s1723] sm:$0xff]
    %v1725 = vld [vmem:[%s1723 + $0x8] sm:$0xff]
    %v1726 = vld [vmem:[%s1723 + $0x10] sm:$0xff]
    %v1727 = vld [vmem:[%s1723 + $0x18] sm:$0xff]
    %v1728 = vld [vmem:[%s1723 + $0x20] sm:$0xff]
    %v1729 = vld [vmem:[%s1723 + $0x28] sm:$0xff]
    %v1730 = vld [vmem:[%s1723 + $0x30] sm:$0xff]
    %v1731 = vld [vmem:[%s1723 + $0x38] sm:$0xff]
    %s1732 = scalar_lea.vmem %s16, 1
    %v1733 = vld [vmem:[%s1732] sm:$0x1]
    %v1735 = vlaneseq
    %v1736 = vshrl.u32 %v1735, 7
    %v1737 = vsub.s32 0, %v1736
    %v1738 = vrot.slane %v1733, %v1737
    %v1741 = vsel %vm306, %v1721, 0
    %v1744 = vsel %vm306, %v1722, 0
    %1746 = vmatprep.subr.mxu0 0.0
    %1747 = vmatpush1.msra.mxu0 %v1724
    %1748 = vmatprep.subr.mxu0 0.0
    %1749 = vmatpush1.msra.mxu0 %v1725
    %1750 = vmatprep.subr.mxu0 0.0
    %1751 = vmatpush1.msra.mxu0 %v1726
    %1752 = vmatprep.subr.mxu0 0.0
    %1753 = vmatpush1.msra.mxu0 %v1727
    %1754 = vmatprep.subr.mxu0 0.0
    %1755 = vmatpush1.msra.mxu0 %v1728
    %1756 = vmatprep.subr.mxu0 0.0
    %1757 = vmatpush1.msra.mxu0 %v1729
    %1758 = vmatprep.subr.mxu0 0.0
    %1759 = vmatpush1.msra.mxu0 %v1730
    %1760 = vmatprep.subr.mxu0 0.0
    %1761 = vmatpush1.msra.mxu0 %v1731
    %1762 = vmatprep.subr.mxu0 0.0
    %1763 = vmatpush1.msra.mxu0 0.0
    %1764 = vmatprep.subr.mxu0 0.0
    %1765 = vmatpush1.msra.mxu0 0.0
    %1766 = vmatprep.subr.mxu0 0.0
    %1767 = vmatpush1.msra.mxu0 0.0
    %1768 = vmatprep.subr.mxu0 0.0
    %1769 = vmatpush1.msra.mxu0 0.0
    %1770 = vmatprep.subr.mxu0 0.0
    %1771 = vmatpush1.msra.mxu0 0.0
    %1772 = vmatprep.subr.mxu0 0.0
    %1773 = vmatpush1.msra.mxu0 0.0
    %1774 = vmatprep.subr.mxu0 0.0
    %1775 = vmatpush1.msra.mxu0 0.0
    %1776 = vmatprep.subr.mxu0 0.0
    %1777 = vmatpush1.msra.mxu0 0.0
    %1778 = vmatprep.subr.mxu0 0.0
    %1779 = vmatpush1.msra.mxu0 0.0
    %1780 = vmatprep.subr.mxu0 0.0
    %1781 = vmatpush1.msra.mxu0 0.0
    %1782 = vmatprep.subr.mxu0 0.0
    %1783 = vmatpush1.msra.mxu0 0.0
    %1784 = vmatprep.subr.mxu0 0.0
    %1785 = vmatpush1.msra.mxu0 0.0
    %1786 = vmatprep.subr.mxu0 0.0
    %1787 = vmatpush1.msra.mxu0 0.0
    %1788 = vmatprep.subr.mxu0 0.0
    %1789 = vmatpush1.msra.mxu0 0.0
    %1790 = vmatprep.subr.mxu0 0.0
    %1791 = vmatpush1.msra.mxu0 0.0
    %1792 = vmatprep.subr.mxu0 0.0
    %1793 = vmatpush1.msra.mxu0 0.0
    %1794 = vmatprep.subr.mxu0 0.0
    %1795 = vmatpush1.msra.mxu0 0.0
    %1796 = vmatprep.subr.mxu0 0.0
    %1797 = vmatpush1.msra.mxu0 0.0
    %1798 = vmatprep.subr.mxu0 0.0
    %1799 = vmatpush1.msra.mxu0 0.0
    %1800 = vmatprep.subr.mxu0 0.0
    %1801 = vmatpush1.msra.mxu0 0.0
    %1802 = vmatprep.subr.mxu0 0.0
    %1803 = vmatpush1.msra.mxu0 0.0
    %1804 = vmatprep.subr.mxu0 0.0
    %1805 = vmatpush1.msra.mxu0 0.0
    %1806 = vmatprep.subr.mxu0 0.0
    %1807 = vmatpush1.msra.mxu0 0.0
    %1808 = vmatprep.subr.mxu0 0.0
    %1809 = vmatpush1.msra.mxu0 0.0
    %1810 = vmatprep.mubr.f32.mxu0 0.0
    %1811 = vmatmul.mubr.f32.gmra.mrb[0].mxu0 %v1741
    %v1812 = vpop.f32.mrb[0].mxu0
    %v1813 = vadd.f32 %v1738, %v1812
    %v1814 = vpop.f32.mrb[0].mxu0
    %1815 = vmatprep.mubr.f32.mxu0 0.0
    %1816 = vmatmul.mubr.f32.gmra.mrb[0].mxu0 %v1744
    %v1817 = vpop.f32.mrb[0].mxu0
    %v1818 = vadd.f32 %v1738, %v1817
    %v1819 = vpop.f32.mrb[0].mxu0
    %1820 = vdwg.mxu0
    %v1821 = vadd.f32 %v1609, %v1813
    %v1822 = vadd.f32 %v1610, %v1818
    %s1823 = scalar_lea.vmem %s17, 1
    %v1824 = vld [vmem:[%s1823] sm:$0x1]
    %s1825 = scalar_lea.vmem %s18, 1
    %v1826 = vld [vmem:[%s1825] sm:$0x1]
    %v1827 = vsel %vm186, %v1821, 0.0
    %1828 = vadd.xlane.f32.xlu0 %v1827
    %v1829 = vpop.xlane.xlu0 %1828
    %v1830 = vsel %vm186, %v1822, 0.0
    %1831 = vadd.xlane.f32.xlu0 %v1830
    %v1832 = vpop.xlane.xlu0 %1831
    %v1833 = vmul.f32 %v1829, %v193
    %v1834 = vmul.f32 %v1832, %v193
    %v1835 = vsub.f32 %v1821, %v1833
    %v1836 = vsub.f32 %v1822, %v1834
    %v1837 = vmul.f32 %v1835, %v1835
    %v1838 = vmul.f32 %v1836, %v1836
    %v1839 = vsel %vm186, %v1837, 0.0
    %1840 = vadd.xlane.f32.xlu0 %v1839
    %v1841 = vpop.xlane.xlu0 %1840
    %v1842 = vsel %vm186, %v1838, 0.0
    %1843 = vadd.xlane.f32.xlu0 %v1842
    %v1844 = vpop.xlane.xlu0 %1843
    %v1845 = vmul.f32 %v1841, %v193
    %v1846 = vmul.f32 %v1844, %v193
    %v1847 = vadd.f32 %v1845, 1e-12
    %v1848 = vadd.f32 %v1846, 1e-12
    %v1849 = vrsqrt.pop %v1847
    %v1850 = vrsqrt.pop %v1848
    %v1851 = vmul.f32 %v1835, %v1849
    %v1852 = vmul.f32 %v1836, %v1850
    %v1854 = vlaneseq
    %v1855 = vshrl.u32 %v1854, 7
    %v1856 = vsub.s32 0, %v1855
    %v1857 = vrot.slane %v1824, %v1856
    %v1859 = vmul.f32 %v1851, %v1857
    %v1860 = vmul.f32 %v1852, %v1857
    %v1862 = vlaneseq
    %v1863 = vshrl.u32 %v1862, 7
    %v1864 = vsub.s32 0, %v1863
    %v1865 = vrot.slane %v1826, %v1864
    %v1867 = vadd.f32 %v1859, %v1865
    %v1868 = vadd.f32 %v1860, %v1865
    %v1869 = vld [vmem:[%s19] sm:$0xff]
    %v1870 = vld [vmem:[%s19 + $0x8] sm:$0xff]
    %v1871 = vld [vmem:[%s19 + $0x10] sm:$0xff]
    %v1872 = vld [vmem:[%s19 + $0x18] sm:$0xff]
    %v1873 = vld [vmem:[%s20] sm:$0x1]
    %v1875 = vlaneseq
    %v1876 = vshrl.u32 %v1875, 7
    %v1877 = vsub.s32 0, %v1876
    %v1878 = vrot.slane %v1873, %v1877
    %v1881 = vsel %vm186, %v1867, 0
    %v1884 = vsel %vm186, %v1868, 0
    %1886 = vmatprep.subr.mxu0 0.0
    %1887 = vmatpush1.msra.mxu0 %v1869
    %1888 = vmatprep.subr.mxu0 0.0
    %1889 = vmatpush1.msra.mxu0 %v1870
    %1890 = vmatprep.subr.mxu0 0.0
    %1891 = vmatpush1.msra.mxu0 %v1871
    %1892 = vmatprep.subr.mxu0 0.0
    %1893 = vmatpush1.msra.mxu0 %v1872
    %1894 = vmatprep.subr.mxu0 0.0
    %1895 = vmatpush1.msra.mxu0 0.0
    %1896 = vmatprep.subr.mxu0 0.0
    %1897 = vmatpush1.msra.mxu0 0.0
    %1898 = vmatprep.subr.mxu0 0.0
    %1899 = vmatpush1.msra.mxu0 0.0
    %1900 = vmatprep.subr.mxu0 0.0
    %1901 = vmatpush1.msra.mxu0 0.0
    %1902 = vmatprep.subr.mxu0 0.0
    %1903 = vmatpush1.msra.mxu0 0.0
    %1904 = vmatprep.subr.mxu0 0.0
    %1905 = vmatpush1.msra.mxu0 0.0
    %1906 = vmatprep.subr.mxu0 0.0
    %1907 = vmatpush1.msra.mxu0 0.0
    %1908 = vmatprep.subr.mxu0 0.0
    %1909 = vmatpush1.msra.mxu0 0.0
    %1910 = vmatprep.subr.mxu0 0.0
    %1911 = vmatpush1.msra.mxu0 0.0
    %1912 = vmatprep.subr.mxu0 0.0
    %1913 = vmatpush1.msra.mxu0 0.0
    %1914 = vmatprep.subr.mxu0 0.0
    %1915 = vmatpush1.msra.mxu0 0.0
    %1916 = vmatprep.subr.mxu0 0.0
    %1917 = vmatpush1.msra.mxu0 0.0
    %1918 = vmatprep.subr.mxu0 0.0
    %1919 = vmatpush1.msra.mxu0 0.0
    %1920 = vmatprep.subr.mxu0 0.0
    %1921 = vmatpush1.msra.mxu0 0.0
    %1922 = vmatprep.subr.mxu0 0.0
    %1923 = vmatpush1.msra.mxu0 0.0
    %1924 = vmatprep.subr.mxu0 0.0
    %1925 = vmatpush1.msra.mxu0 0.0
    %1926 = vmatprep.subr.mxu0 0.0
    %1927 = vmatpush1.msra.mxu0 0.0
    %1928 = vmatprep.subr.mxu0 0.0
    %1929 = vmatpush1.msra.mxu0 0.0
    %1930 = vmatprep.subr.mxu0 0.0
    %1931 = vmatpush1.msra.mxu0 0.0
    %1932 = vmatprep.subr.mxu0 0.0
    %1933 = vmatpush1.msra.mxu0 0.0
    %1934 = vmatprep.subr.mxu0 0.0
    %1935 = vmatpush1.msra.mxu0 0.0
    %1936 = vmatprep.subr.mxu0 0.0
    %1937 = vmatpush1.msra.mxu0 0.0
    %1938 = vmatprep.subr.mxu0 0.0
    %1939 = vmatpush1.msra.mxu0 0.0
    %1940 = vmatprep.subr.mxu0 0.0
    %1941 = vmatpush1.msra.mxu0 0.0
    %1942 = vmatprep.subr.mxu0 0.0
    %1943 = vmatpush1.msra.mxu0 0.0
    %1944 = vmatprep.subr.mxu0 0.0
    %1945 = vmatpush1.msra.mxu0 0.0
    %1946 = vmatprep.subr.mxu0 0.0
    %1947 = vmatpush1.msra.mxu0 0.0
    %1948 = vmatprep.subr.mxu0 0.0
    %1949 = vmatpush1.msra.mxu0 0.0
    %1950 = vmatprep.mubr.f32.mxu0 0.0
    %1951 = vmatmul.mubr.f32.gmra.mrb[0].mxu0 %v1881
    %v1952 = vpop.f32.mrb[0].mxu0
    %v1953 = vadd.f32 %v1878, %v1952
    %v1954 = vpop.f32.mrb[0].mxu0
    %1955 = vmatprep.mubr.f32.mxu0 0.0
    %1956 = vmatmul.mubr.f32.gmra.mrb[0].mxu0 %v1884
    %v1957 = vpop.f32.mrb[0].mxu0
    %v1958 = vadd.f32 %v1878, %v1957
    %v1959 = vpop.f32.mrb[0].mxu0
    %1960 = vdwg.mxu0
    %1961 = vmax.xlane.f32.xlu0 %v1953
    %v1962 = vpop.xlane.xlu0 %1961
    %1963 = vmax.xlane.f32.xlu0 %v1958
    %v1964 = vpop.xlane.xlu0 %1963
    %v1965 = vsub.f32 %v1953, %v1962
    %v1966 = vsub.f32 %v1958, %v1964
    %v1967 = vmul.f32 %v1965, 1.442695
    %v1968 = vpow.pop %v1967
    %v1969 = vmul.f32 %v1966, 1.442695
    %v1970 = vpow.pop %v1969
    %1971 = vadd.xlane.f32.xlu0 %v1968
    %v1972 = vpop.xlane.xlu0 %1971
    %1973 = vadd.xlane.f32.xlu0 %v1970
    %v1974 = vpop.xlane.xlu0 %1973
    %v1975 = vrcp.pop %v1972
    %v1976 = vmul.f32 %v1968, %v1975
    %v1977 = vrcp.pop %v1974
    %v1978 = vmul.f32 %v1970, %v1977
    %1979 = vst [vmem:[#allocation2] sm:$0xff] %v1976
    %1980 = vst [vmem:[#allocation2 + $0x8] sm:$0xff] %v1978
    // Predicated region
    $region86: #{language_model_forward.1} parent=1 // pred_check
      _
    $region87: #{language_model_forward.1} parent=1 // pred_check_branch
      %1982 = sbr.rel (0) target = $region89
    $region88: #{language_model_forward.1} parent=1 // pred_region
      %s1984 = ssub.s32 256, 256
      %1985 = vsyncadd [#allocation3], %s1984
      %s1986 = sshll.u32 [#allocation2], 4
      %s1987 = int_to_ptr.vmem [resolvable:$true] %s1986
      %1992 = dma.vmem_to_hbm [thread:$0]  %s1987, 256, %s21, [#allocation3], 128, 128, 8
    $region89: #{language_model_forward.1} parent=1 // pred_fallthru
      _
    // Predicated region
    $region90: #{language_model_forward.1} parent=1 // pred_check
      _
    $region91: #{language_model_forward.1} parent=1 // pred_check_branch
      %1994 = sbr.rel (0) target = $region93
    $region92: #{language_model_forward.1} parent=1 // pred_region
      %1995 = dma.done [#allocation3], 256
    $region93: #{language_model_forward.1} parent=1 // pred_fallthru
      _
    %1996 = vsyncpa [#allocation3], 1

</llo_original>
